<compile_context>
chip_gen: v6e
topology: v6e:2x2x1
jax: 0.10.0
libtpu: 0.0.40
codegen_flags: <defaults>
</compile_context>

<pallas_src>
import functools
import math

import jax
import jax.numpy as jnp
from jax.experimental import pallas as pl
from jax.experimental.pallas import tpu as pltpu


def _round_up(v, m):
    return (v + m - 1) // m * m


def _tpu_generation():
    try:
        kind = jax.devices()[0].device_kind.lower()
    except Exception:
        kind = ""
    if "v5 lite" in kind or "v5e" in kind or "v5lite" in kind:
        return "v5e"
    if "7" in kind:
        return "v7x"
    return "v6e"


# ----------------------------- kernels --------------------------------------


def _gc_layer1_kernel(adj_ref, s1_ref, s1_tile_ref, meta_ref, b1_ref, w2p_ref,
                      out_ref, acc_ref):
    """s2_tile = relu((adj@s1 + gma*s1_i) * inv_denom + b1) @ W2_pad."""
    k = pl.program_id(1)

    @pl.when(k == 0)
    def _():
        acc_ref[...] = jnp.zeros_like(acc_ref)

    # dominant matmul: bf16 x bf16 on the MXU, f32 accumulation in VMEM scratch
    acc_ref[...] += jnp.dot(adj_ref[...], s1_ref[...],
                            preferred_element_type=jnp.float32)

    @pl.when(k == pl.num_programs(1) - 1)
    def _():
        meta = meta_ref[...]                       # (tm, 2) f32: [gma, 1/denom]
        gma = meta[:, 0:1]
        inv = meta[:, 1:2]
        num = acc_ref[...] + gma * s1_tile_ref[...].astype(jnp.float32)
        h = jnp.maximum(num * inv + b1_ref[...], 0.0)
        # Fused second feature transform: h never touches HBM, output is
        # lane-dense (tm, 128) bf16.
        out_ref[...] = jnp.dot(h.astype(jnp.bfloat16), w2p_ref[...],
                               preferred_element_type=jnp.float32
                               ).astype(out_ref.dtype)


def _gc_layer2_kernel(adj_ref, s2_ref, s2_tile_ref, meta_ref, b2p_ref,
                      out_ref, acc_ref):
    """out_tile = log_softmax((adj@s2 + gma*s2_i) * inv_denom + b2_pad)."""
    k = pl.program_id(1)

    @pl.when(k == 0)
    def _():
        acc_ref[...] = jnp.zeros_like(acc_ref)

    acc_ref[...] += jnp.dot(adj_ref[...], s2_ref[...],
                            preferred_element_type=jnp.float32)

    @pl.when(k == pl.num_programs(1) - 1)
    def _():
        meta = meta_ref[...]
        gma = meta[:, 0:1]
        inv = meta[:, 1:2]
        z = (acc_ref[...] + gma * s2_tile_ref[...].astype(jnp.float32)) * inv \
            + b2p_ref[...]
        m = jnp.max(z, axis=1, keepdims=True)
        shifted = z - m
        lse = jnp.log(jnp.sum(jnp.exp(shifted), axis=1, keepdims=True))
        out_ref[...] = shifted - lse


# ----------------------------- wrapper ---------------------------------------


@functools.partial(jax.jit, static_argnames=("tm", "tk"))
def gcn_forward(x, adj, gma, w1, b1, w2, b2, *, tm=None, tk=None):
    N = x.shape[0]
    nhid = w1.shape[1]
    nclass = w2.shape[1]
    C = max(128, _round_up(nclass, 128))          # lane-dense padded classes
    f32 = jnp.float32

    # --- generation-aware VMEM / tile budgeting --------------------------------
    gen = _tpu_generation()
    mxu_m = 128 if gen == "v5e" else 256
    vmem_budget = {"v7x": 50, "v6e": 100, "v5e": 100}.get(gen, 64) * 1024 * 1024

    if tm is None:
        tm = mxu_m
    tm = max(16, _round_up(int(tm), 16))
    tm = min(tm, _round_up(N, 16))

    lane_h = max(_round_up(nhid, 128), C)         # widest streamed s lane width
    if tk is None:
        # per-k-step bytes that scale with tk: bf16 adj tile + bf16 s tile,
        # both double-buffered by the pipeline
        fixed = (2 * tm * lane_h * 2              # s row-tile (double-buffered bf16)
                 + 2 * tm * lane_h * 4            # f32 accumulator + output block
                 + nhid * C * 2 * 2               # W2_pad (double-buffered bf16)
                 + 256 * 1024)                    # misc / compiler scratch headroom
        per_tk = 2 * tm * 2 + 2 * lane_h * 2
        tk = (int(vmem_budget * 0.75) - fixed) // per_tk
        tk = max(128, min(int(tk), 8192))
    tk = max(128, (int(tk) // 128) * 128)

    if _round_up(N, 16) <= tk:
        Np = _round_up(N, tm)
        tk = Np                                   # single reduction step, full-extent block
    else:
        Np = _round_up(N, math.lcm(tm, tk))
    pad_n = Np - N

    # --- hoisted exact f32 normalization (p=1 row normalize of diag(gma)+adj) --
    adj32 = adj.astype(f32)
    gma32 = gma.astype(f32)
    d = jnp.diagonal(adj32)
    rowsum = jnp.sum(jnp.abs(adj32), axis=1)
    denom = jnp.maximum(rowsum - jnp.abs(d) + jnp.abs(d + gma32), 1e-12)
    inv = 1.0 / denom
    meta = jnp.stack([jnp.pad(gma32, (0, pad_n), constant_values=1.0),
                      jnp.pad(inv, (0, pad_n), constant_values=1.0)],
                     axis=1)                                        # (Np, 2) f32

    # --- padded / casted operands ----------------------------------------------
    adj_p = jnp.pad(adj32, ((0, pad_n), (0, pad_n))).astype(jnp.bfloat16)
    x_p = jnp.pad(x.astype(f32), ((0, pad_n), (0, 0)))

    # hoisted first feature transform, stored bf16 for the MXU stream
    s1 = (x_p @ w1.astype(f32)).astype(jnp.bfloat16)                # (Np, nhid)

    b1r = b1.astype(f32).reshape(1, nhid)
    w2p = jnp.zeros((nhid, C), jnp.bfloat16).at[:, :nclass].set(
        w2.astype(jnp.bfloat16))
    b2p = jnp.full((1, C), -1e30, f32).at[0, :nclass].set(b2.astype(f32))

    grid = (Np // tm, Np // tk)
    cparams = pltpu.CompilerParams(
        dimension_semantics=("parallel", "arbitrary"),
        vmem_limit_bytes=int(vmem_budget),
    )

    adj_spec = pl.BlockSpec((tm, tk), lambda i, k: (i, k))
    meta_spec = pl.BlockSpec((tm, 2), lambda i, k: (i, 0))

    # ---- layer 1: s2 = relu(hat @ s1 + b1) @ W2_pad  (bf16 output) ----
    s2 = pl.pallas_call(
        _gc_layer1_kernel,
        out_shape=jax.ShapeDtypeStruct((Np, C), jnp.bfloat16),
        grid=grid,
        in_specs=[
            adj_spec,
            pl.BlockSpec((tk, nhid), lambda i, k: (k, 0)),   # s1 K-stream
            pl.BlockSpec((tm, nhid), lambda i, k: (i, 0)),   # s1 rows of this tile
            meta_spec,                                       # [gma, 1/denom]
            pl.BlockSpec((1, nhid), lambda i, k: (0, 0)),    # b1
            pl.BlockSpec((nhid, C), lambda i, k: (0, 0)),    # W2 padded (bf16)
        ],
        out_specs=pl.BlockSpec((tm, C), lambda i, k: (i, 0)),
        scratch_shapes=[pltpu.VMEM((tm, nhid), jnp.float32)],
        compiler_params=cparams,
        cost_estimate=pl.CostEstimate(
            flops=int(2 * Np * Np * nhid + 2 * Np * nhid * C),
            transcendentals=0,
            bytes_accessed=int(Np * Np * 2 + Np * (3 * nhid + C) * 2),
        ),
    )(adj_p, s1, s1, meta, b1r, w2p)

    # ---- layer 2: out = log_softmax(hat @ s2 + b2_pad) ----
    out_p = pl.pallas_call(
        _gc_layer2_kernel,
        out_shape=jax.ShapeDtypeStruct((Np, C), jnp.float32),
        grid=grid,
        in_specs=[
            adj_spec,
            pl.BlockSpec((tk, C), lambda i, k: (k, 0)),      # s2 K-stream (bf16)
            pl.BlockSpec((tm, C), lambda i, k: (i, 0)),      # s2 rows of this tile
            meta_spec,
            pl.BlockSpec((1, C), lambda i, k: (0, 0)),       # b2 padded
        ],
        out_specs=pl.BlockSpec((tm, C), lambda i, k: (i, 0)),
        scratch_shapes=[pltpu.VMEM((tm, C), jnp.float32)],
        compiler_params=cparams,
        cost_estimate=pl.CostEstimate(
            flops=int(2 * Np * Np * C),
            transcendentals=int(Np * C),
            bytes_accessed=int(Np * Np * 2 + Np * C * (2 + 2 + 4)),
        ),
    )(adj_p, s2, s2, meta, b2p)

    return out_p[:N, :nclass]


def gcn_reference(x, adj, gma, w1, b1, w2, b2):
    hat = adj + jnp.diag(gma)
    hat = hat / jnp.maximum(jnp.sum(jnp.abs(hat), axis=1, keepdims=True), 1e-12)
    h = jax.nn.relu(hat @ (x @ w1) + b1)
    z = hat @ (h @ w2) + b2
    return jax.nn.log_softmax(z, axis=1)


if __name__ == "__main__":
    # Small shapes; tm/tk chosen so the padded grid has multiple tiles on both
    # the row axis and the reduction axis (Np = 384 -> grid (6, 3)), exercising
    # the zero-padding, K-accumulation and row-parallel paths.
    N, nfeat, nhid, nclass = 300, 16, 32, 5

    key = jax.random.PRNGKey(0)
    kx, ka, kg, kw1, kb1, kw2, kb2 = jax.random.split(key, 7)

    x = jax.random.normal(kx, (N, nfeat), dtype=jnp.float32)
    adj = jax.random.uniform(ka, (N, N), dtype=jnp.float32)
    adj = (adj + adj.T) * 0.5                      # symmetric-ish adjacency
    gma = jax.random.normal(kg, (N,), dtype=jnp.float32) * 0.1 + 1.0

    w1 = jax.random.normal(kw1, (nfeat, nhid), dtype=jnp.float32) * 0.1
    b1 = jax.random.normal(kb1, (nhid,), dtype=jnp.float32) * 0.1
    w2 = jax.random.normal(kw2, (nhid, nclass), dtype=jnp.float32) * 0.1
    b2 = jax.random.normal(kb2, (nclass,), dtype=jnp.float32) * 0.1

    out = gcn_forward(x, adj, gma, w1, b1, w2, b2, tm=64, tk=128)
    jax.block_until_ready(out)

    ref = gcn_reference(x, adj, gma, w1, b1, w2, b2)
    assert out.shape == (N, nclass)
    # bf16 MXU streaming of adj / s1 / s2 -> loosened tolerance (denominator is exact f32)
    assert jnp.allclose(out, ref, atol=2e-2, rtol=2e-2), float(jnp.max(jnp.abs(out - ref)))

    print("KERNEL_OK")
</pallas_src>

<mosaic_0001>
module attributes {stable_mosaic.version = 11 : i64} {
  func.func @_gc_layer2_kernel(%arg0: i32, %arg1: i32, %arg2: memref<64x128xbf16, #tpu.memory_space<vmem>>, %arg3: memref<128x128xbf16, #tpu.memory_space<vmem>>, %arg4: memref<64x128xbf16, #tpu.memory_space<vmem>>, %arg5: memref<64x2xf32, #tpu.memory_space<vmem>>, %arg6: memref<1x128xf32, #tpu.memory_space<vmem>>, %arg7: memref<64x128xf32, #tpu.memory_space<vmem>>, %arg8: memref<64x128xf32, #tpu.memory_space<vmem>>) attributes {dimension_semantics = [#tpu.dimension_semantics<parallel>, #tpu.dimension_semantics<arbitrary>], iteration_bounds = array<i64: 6, 3>, scalar_prefetch = 0 : i64, scratch_operands = 1 : i64, tpu.core_type = #tpu.core_type<tc>, window_params = [{transform_indices = @transform_0, window_bounds = array<i64: 64, 128>}, {transform_indices = @transform_1, window_bounds = array<i64: 128, 128>}, {transform_indices = @transform_2, window_bounds = array<i64: 64, 128>}, {transform_indices = @transform_3, window_bounds = array<i64: 64, 2>}, {pipeline_mode = #tpu.pipeline_mode<synchronous>, transform_indices = @transform_4, window_bounds = array<i64: 1, 128>}, {transform_indices = @transform_5, window_bounds = array<i64: 64, 128>}]} {
    %c0_i32 = arith.constant 0 : i32
    %0 = arith.cmpi eq, %arg1, %c0_i32 : i32
    %1 = arith.extui %0 : i1 to i32
    %c0_i32_0 = arith.constant 0 : i32
    %2 = arith.cmpi ne, %1, %c0_i32_0 : i32
    scf.if %2 {
      %cst_9 = arith.constant 0.000000e+00 : f32
      %12 = vector.broadcast %cst_9 : f32 to vector<64x128xf32>
      %c0_10 = arith.constant 0 : index
      %c0_11 = arith.constant 0 : index
      %13 = vector.load %arg8[%c0_10, %c0_11] : memref<64x128xf32, #tpu.memory_space<vmem>>, vector<64x128xf32>
      tpu.vector_store %arg8[%c0_10, %c0_11], %12 {strides = array<i32>} : memref<64x128xf32, #tpu.memory_space<vmem>>, vector<64x128xf32>,
    } else {
    }
    %c0 = arith.constant 0 : index
    %c0_1 = arith.constant 0 : index
    %3 = vector.load %arg8[%c0, %c0_1] : memref<64x128xf32, #tpu.memory_space<vmem>>, vector<64x128xf32>
    %c0_2 = arith.constant 0 : index
    %c0_3 = arith.constant 0 : index
    %4 = vector.load %arg2[%c0_2, %c0_3] : memref<64x128xbf16, #tpu.memory_space<vmem>>, vector<64x128xbf16>
    %c0_4 = arith.constant 0 : index
    %c0_5 = arith.constant 0 : index
    %5 = vector.load %arg3[%c0_4, %c0_5] : memref<128x128xbf16, #tpu.memory_space<vmem>>, vector<128x128xbf16>
    %cst = arith.constant dense<0.000000e+00> : vector<64x128xf32>
    %6 = tpu.matmul %4, %5, %cst {dimension_numbers = #tpu.dot_dimension_numbers<[1], [0], [0], [1], [0, 0, 1, 1], [], []>} : vector<64x128xbf16>, vector<128x128xbf16>, vector<64x128xf32> -> vector<64x128xf32>
    %7 = arith.addf %3, %6 : vector<64x128xf32>
    %c0_6 = arith.constant 0 : index
    %c0_7 = arith.constant 0 : index
    %8 = vector.load %arg8[%c0_6, %c0_7] : memref<64x128xf32, #tpu.memory_space<vmem>>, vector<64x128xf32>
    tpu.vector_store %arg8[%c0_6, %c0_7], %7 {strides = array<i32>} : memref<64x128xf32, #tpu.memory_space<vmem>>, vector<64x128xf32>,
    %c2_i32 = arith.constant 2 : i32
    %9 = arith.cmpi eq, %arg1, %c2_i32 : i32
    %10 = arith.extui %9 : i1 to i32
    %c0_i32_8 = arith.constant 0 : i32
    %11 = arith.cmpi ne, %10, %c0_i32_8 : i32
    scf.if %11 {
      %c0_9 = arith.constant 0 : index
      %c0_10 = arith.constant 0 : index
      %12 = vector.load %arg5[%c0_9, %c0_10] : memref<64x2xf32, #tpu.memory_space<vmem>>, vector<64x2xf32>
      %13 = vector.extract_strided_slice %12 {offsets = [0, 0], sizes = [64, 1], strides = [1, 1]} : vector<64x2xf32> to vector<64x1xf32>
      %14 = vector.extract_strided_slice %12 {offsets = [0, 1], sizes = [64, 1], strides = [1, 1]} : vector<64x2xf32> to vector<64x1xf32>
      %c0_11 = arith.constant 0 : index
      %c0_12 = arith.constant 0 : index
      %15 = vector.load %arg8[%c0_11, %c0_12] : memref<64x128xf32, #tpu.memory_space<vmem>>, vector<64x128xf32>
      %c0_13 = arith.constant 0 : index
      %c0_14 = arith.constant 0 : index
      %16 = vector.load %arg4[%c0_13, %c0_14] : memref<64x128xbf16, #tpu.memory_space<vmem>>, vector<64x128xbf16>
      %17 = arith.extf %16 : vector<64x128xbf16> to vector<64x128xf32>
      %18 = vector.broadcast %13 : vector<64x1xf32> to vector<64x128xf32>
      %19 = arith.mulf %18, %17 : vector<64x128xf32>
      %20 = arith.addf %15, %19 : vector<64x128xf32>
      %21 = vector.broadcast %14 : vector<64x1xf32> to vector<64x128xf32>
      %22 = arith.mulf %20, %21 : vector<64x128xf32>
      %c0_15 = arith.constant 0 : index
      %c0_16 = arith.constant 0 : index
      %23 = vector.load %arg6[%c0_15, %c0_16] : memref<1x128xf32, #tpu.memory_space<vmem>>, vector<1x128xf32>
      %24 = vector.broadcast %23 : vector<1x128xf32> to vector<64x128xf32>
      %25 = arith.addf %22, %24 : vector<64x128xf32>
      %cst_17 = arith.constant dense<0xFF800000> : vector<64xf32>
      %26 = vector.multi_reduction <maximumf>, %25, %cst_17 [1] : vector<64x128xf32> to vector<64xf32>
      %27 = vector.shape_cast %26 : vector<64xf32> to vector<64x1xf32>
      %28 = vector.broadcast %27 : vector<64x1xf32> to vector<64x128xf32>
      %29 = arith.subf %25, %28 : vector<64x128xf32>
      %30 = math.exp %29 : vector<64x128xf32>
      %cst_18 = arith.constant dense<0.000000e+00> : vector<64xf32>
      %31 = vector.multi_reduction <add>, %30, %cst_18 [1] : vector<64x128xf32> to vector<64xf32>
      %32 = vector.shape_cast %31 : vector<64xf32> to vector<64x1xf32>
      %33 = math.log %32 : vector<64x1xf32>
      %34 = vector.broadcast %33 : vector<64x1xf32> to vector<64x128xf32>
      %35 = arith.subf %29, %34 : vector<64x128xf32>
      %c0_19 = arith.constant 0 : index
      %c0_20 = arith.constant 0 : index
      %36 = vector.load %arg7[%c0_19, %c0_20] : memref<64x128xf32, #tpu.memory_space<vmem>>, vector<64x128xf32>
      tpu.vector_store %arg7[%c0_19, %c0_20], %35 {strides = array<i32>} : memref<64x128xf32, #tpu.memory_space<vmem>>, vector<64x128xf32>,
    } else {
    }
    return
  }
  func.func @transform_0(%arg0: i32, %arg1: i32) -> (i32, i32) {
    %c0_i32 = arith.constant 0 : i32
    return %arg0, %arg1 : i32, i32
  }
  func.func @transform_1(%arg0: i32, %arg1: i32) -> (i32, i32) {
    %c0_i32 = arith.constant 0 : i32
    %c0_i32_0 = arith.constant 0 : i32
    return %arg1, %c0_i32 : i32, i32
  }
  func.func @transform_2(%arg0: i32, %arg1: i32) -> (i32, i32) {
    %c0_i32 = arith.constant 0 : i32
    %c0_i32_0 = arith.constant 0 : i32
    return %arg0, %c0_i32 : i32, i32
  }
  func.func @transform_3(%arg0: i32, %arg1: i32) -> (i32, i32) {
    %c0_i32 = arith.constant 0 : i32
    %c0_i32_0 = arith.constant 0 : i32
    return %arg0, %c0_i32 : i32, i32
  }
  func.func @transform_4(%arg0: i32, %arg1: i32) -> (i32, i32) {
    %c0_i32 = arith.constant 0 : i32
    %c0_i32_0 = arith.constant 0 : i32
    %c0_i32_1 = arith.constant 0 : i32
    return %c0_i32, %c0_i32_0 : i32, i32
  }
  func.func @transform_5(%arg0: i32, %arg1: i32) -> (i32, i32) {
    %c0_i32 = arith.constant 0 : i32
    %c0_i32_0 = arith.constant 0 : i32
    return %arg0, %c0_i32 : i32, i32
  }
}

module attributes {stable_mosaic.version = 11 : i64} {
  func.func @_gc_layer1_kernel(%arg0: i32, %arg1: i32, %arg2: memref<64x128xbf16, #tpu.memory_space<vmem>>, %arg3: memref<128x32xbf16, #tpu.memory_space<vmem>>, %arg4: memref<64x32xbf16, #tpu.memory_space<vmem>>, %arg5: memref<64x2xf32, #tpu.memory_space<vmem>>, %arg6: memref<1x32xf32, #tpu.memory_space<vmem>>, %arg7: memref<32x128xbf16, #tpu.memory_space<vmem>>, %arg8: memref<64x128xbf16, #tpu.memory_space<vmem>>, %arg9: memref<64x32xf32, #tpu.memory_space<vmem>>) attributes {dimension_semantics = [#tpu.dimension_semantics<parallel>, #tpu.dimension_semantics<arbitrary>], iteration_bounds = array<i64: 6, 3>, scalar_prefetch = 0 : i64, scratch_operands = 1 : i64, tpu.core_type = #tpu.core_type<tc>, window_params = [{transform_indices = @transform_0, window_bounds = array<i64: 64, 128>}, {transform_indices = @transform_1, window_bounds = array<i64: 128, 32>}, {transform_indices = @transform_2, window_bounds = array<i64: 64, 32>}, {transform_indices = @transform_3, window_bounds = array<i64: 64, 2>}, {pipeline_mode = #tpu.pipeline_mode<synchronous>, transform_indices = @transform_4, window_bounds = array<i64: 1, 32>}, {pipeline_mode = #tpu.pipeline_mode<synchronous>, transform_indices = @transform_5, window_bounds = array<i64: 32, 128>}, {transform_indices = @transform_6, window_bounds = array<i64: 64, 128>}]} {
    %c0_i32 = arith.constant 0 : i32
    %0 = arith.cmpi eq, %arg1, %c0_i32 : i32
    %1 = arith.extui %0 : i1 to i32
    %c0_i32_0 = arith.constant 0 : i32
    %2 = arith.cmpi ne, %1, %c0_i32_0 : i32
    scf.if %2 {
      %cst_9 = arith.constant 0.000000e+00 : f32
      %12 = vector.broadcast %cst_9 : f32 to vector<64x32xf32>
      %c0_10 = arith.constant 0 : index
      %c0_11 = arith.constant 0 : index
      %13 = vector.load %arg9[%c0_10, %c0_11] : memref<64x32xf32, #tpu.memory_space<vmem>>, vector<64x32xf32>
      tpu.vector_store %arg9[%c0_10, %c0_11], %12 {strides = array<i32>} : memref<64x32xf32, #tpu.memory_space<vmem>>, vector<64x32xf32>,
    } else {
    }
    %c0 = arith.constant 0 : index
    %c0_1 = arith.constant 0 : index
    %3 = vector.load %arg9[%c0, %c0_1] : memref<64x32xf32, #tpu.memory_space<vmem>>, vector<64x32xf32>
    %c0_2 = arith.constant 0 : index
    %c0_3 = arith.constant 0 : index
    %4 = vector.load %arg2[%c0_2, %c0_3] : memref<64x128xbf16, #tpu.memory_space<vmem>>, vector<64x128xbf16>
    %c0_4 = arith.constant 0 : index
    %c0_5 = arith.constant 0 : index
    %5 = vector.load %arg3[%c0_4, %c0_5] : memref<128x32xbf16, #tpu.memory_space<vmem>>, vector<128x32xbf16>
    %cst = arith.constant dense<0.000000e+00> : vector<64x32xf32>
    %6 = tpu.matmul %4, %5, %cst {dimension_numbers = #tpu.dot_dimension_numbers<[1], [0], [0], [1], [0, 0, 1, 1], [], []>} : vector<64x128xbf16>, vector<128x32xbf16>, vector<64x32xf32> -> vector<64x32xf32>
    %7 = arith.addf %3, %6 : vector<64x32xf32>
    %c0_6 = arith.constant 0 : index
    %c0_7 = arith.constant 0 : index
    %8 = vector.load %arg9[%c0_6, %c0_7] : memref<64x32xf32, #tpu.memory_space<vmem>>, vector<64x32xf32>
    tpu.vector_store %arg9[%c0_6, %c0_7], %7 {strides = array<i32>} : memref<64x32xf32, #tpu.memory_space<vmem>>, vector<64x32xf32>,
    %c2_i32 = arith.constant 2 : i32
    %9 = arith.cmpi eq, %arg1, %c2_i32 : i32
    %10 = arith.extui %9 : i1 to i32
    %c0_i32_8 = arith.constant 0 : i32
    %11 = arith.cmpi ne, %10, %c0_i32_8 : i32
    scf.if %11 {
      %c0_9 = arith.constant 0 : index
      %c0_10 = arith.constant 0 : index
      %12 = vector.load %arg5[%c0_9, %c0_10] : memref<64x2xf32, #tpu.memory_space<vmem>>, vector<64x2xf32>
      %13 = vector.extract_strided_slice %12 {offsets = [0, 0], sizes = [64, 1], strides = [1, 1]} : vector<64x2xf32> to vector<64x1xf32>
      %14 = vector.extract_strided_slice %12 {offsets = [0, 1], sizes = [64, 1], strides = [1, 1]} : vector<64x2xf32> to vector<64x1xf32>
      %c0_11 = arith.constant 0 : index
      %c0_12 = arith.constant 0 : index
      %15 = vector.load %arg9[%c0_11, %c0_12] : memref<64x32xf32, #tpu.memory_space<vmem>>, vector<64x32xf32>
      %c0_13 = arith.constant 0 : index
      %c0_14 = arith.constant 0 : index
      %16 = vector.load %arg4[%c0_13, %c0_14] : memref<64x32xbf16, #tpu.memory_space<vmem>>, vector<64x32xbf16>
      %17 = arith.extf %16 : vector<64x32xbf16> to vector<64x32xf32>
      %18 = vector.broadcast %13 : vector<64x1xf32> to vector<64x32xf32>
      %19 = arith.mulf %18, %17 : vector<64x32xf32>
      %20 = arith.addf %15, %19 : vector<64x32xf32>
      %21 = vector.broadcast %14 : vector<64x1xf32> to vector<64x32xf32>
      %22 = arith.mulf %20, %21 : vector<64x32xf32>
      %c0_15 = arith.constant 0 : index
      %c0_16 = arith.constant 0 : index
      %23 = vector.load %arg6[%c0_15, %c0_16] : memref<1x32xf32, #tpu.memory_space<vmem>>, vector<1x32xf32>
      %24 = vector.broadcast %23 : vector<1x32xf32> to vector<64x32xf32>
      %25 = arith.addf %22, %24 : vector<64x32xf32>
      %cst_17 = arith.constant 0.000000e+00 : f32
      %26 = vector.broadcast %cst_17 : f32 to vector<64x32xf32>
      %27 = arith.maximumf %25, %26 : vector<64x32xf32>
      %28 = arith.truncf %27 : vector<64x32xf32> to vector<64x32xbf16>
      %c0_18 = arith.constant 0 : index
      %c0_19 = arith.constant 0 : index
      %29 = vector.load %arg7[%c0_18, %c0_19] : memref<32x128xbf16, #tpu.memory_space<vmem>>, vector<32x128xbf16>
      %cst_20 = arith.constant dense<0.000000e+00> : vector<64x128xf32>
      %30 = tpu.matmul %28, %29, %cst_20 {dimension_numbers = #tpu.dot_dimension_numbers<[1], [0], [0], [1], [0, 0, 1, 1], [], []>} : vector<64x32xbf16>, vector<32x128xbf16>, vector<64x128xf32> -> vector<64x128xf32>
      %31 = arith.truncf %30 : vector<64x128xf32> to vector<64x128xbf16>
      %c0_21 = arith.constant 0 : index
      %c0_22 = arith.constant 0 : index
      %32 = vector.load %arg8[%c0_21, %c0_22] : memref<64x128xbf16, #tpu.memory_space<vmem>>, vector<64x128xbf16>
      tpu.vector_store %arg8[%c0_21, %c0_22], %31 {strides = array<i32>} : memref<64x128xbf16, #tpu.memory_space<vmem>>, vector<64x128xbf16>,
    } else {
    }
    return
  }
  func.func @transform_0(%arg0: i32, %arg1: i32) -> (i32, i32) {
    %c0_i32 = arith.constant 0 : i32
    return %arg0, %arg1 : i32, i32
  }
  func.func @transform_1(%arg0: i32, %arg1: i32) -> (i32, i32) {
    %c0_i32 = arith.constant 0 : i32
    %c0_i32_0 = arith.constant 0 : i32
    return %arg1, %c0_i32 : i32, i32
  }
  func.func @transform_2(%arg0: i32, %arg1: i32) -> (i32, i32) {
    %c0_i32 = arith.constant 0 : i32
    %c0_i32_0 = arith.constant 0 : i32
    return %arg0, %c0_i32 : i32, i32
  }
  func.func @transform_3(%arg0: i32, %arg1: i32) -> (i32, i32) {
    %c0_i32 = arith.constant 0 : i32
    %c0_i32_0 = arith.constant 0 : i32
    return %arg0, %c0_i32 : i32, i32
  }
  func.func @transform_4(%arg0: i32, %arg1: i32) -> (i32, i32) {
    %c0_i32 = arith.constant 0 : i32
    %c0_i32_0 = arith.constant 0 : i32
    %c0_i32_1 = arith.constant 0 : i32
    return %c0_i32, %c0_i32_0 : i32, i32
  }
  func.func @transform_5(%arg0: i32, %arg1: i32) -> (i32, i32) {
    %c0_i32 = arith.constant 0 : i32
    %c0_i32_0 = arith.constant 0 : i32
    %c0_i32_1 = arith.constant 0 : i32
    return %c0_i32, %c0_i32_0 : i32, i32
  }
  func.func @transform_6(%arg0: i32, %arg1: i32) -> (i32, i32) {
    %c0_i32 = arith.constant 0 : i32
    %c0_i32_0 = arith.constant 0 : i32
    return %arg0, %c0_i32 : i32, i32
  }
}

</mosaic_0001>

<llo_original>
// kernel: gcn_forward.3
$region0: #{gcn_forward.3}
  #allocation0 [shape = 'u32[]', space=smem, size = 0x4, offset = 0x4, fixed_abs, tag = 'smem constant byte address 0x4 - core index']
  #allocation1 [shape = 'u32[144,128]{1,0:T(1,128)}', space=vmem, size = 0x12000, scoped, tag = 'internal scratch']
  #allocation2 [shape = 'f32[64,128]{1,0:T(8,128)}', space=vmem, size = 0x8000, scoped, tag = 'scratch operand']
  %s0 = inlined_call_operand.vmem [shape: bf16[384,384], index: 0, kind: input, shape index: {}]
  %s1 = inlined_call_operand.vmem [shape: bf16[384,128], index: 1, kind: input, shape index: {}, may-alias: {1,2}]
  %s2 = inlined_call_operand.vmem [shape: bf16[384,128], index: 2, kind: input, shape index: {}, may-alias: {1,2}]
  %s3 = inlined_call_operand.vmem [shape: f32[384,2], index: 3, kind: input, shape index: {}]
  %s4 = inlined_call_operand.vmem [shape: f32[1,128], index: 4, kind: input, shape index: {}]
  %s5 = inlined_call_operand.vmem [shape: f32[384,128], index: 5, kind: output, shape index: {}]
  %s6 = sld [smem:[#allocation0]]
  $region102: #{gcn_forward.3} parent=0
    _
  %s8 = ssub.s32 1, %s6
  %s9 = scalar_select 0, %s8, %s6
  $region1: #{gcn_forward.3} parent=0
    #allocation3 [shape = 'u8[32768]{0}', space=vmem, size = 0x8000, scoped, tag = 'input window, operand 0']
    loop: start=0, step=1, limit=20
    $region2: #{gcn_forward.3} parent=1 // loop_pre_header
      _
    $region3: #{gcn_forward.3} parent=1 // loop_header
      %s11 = sphi 0, %s15
      %p12 = scmp.ge.s32.totalorder %s11, 20
      %s18 = sphi 0, %s30
      %s19 = sphi 0, %s26
      %s20 = sphi 0, %s18
      %s21 = sphi 0, %s19
      %s22 = sphi 0, %s20
      %s23 = sphi 0, %s21
      %s35 = sphi 0, %s37
      %s38 = sphi 0, %s35
      %s39 = sphi 0, %s38
      %s55 = sphi 0, %s39
      %s61 = sphi 0, %s63
      %s64 = sphi 0, %s61
      %s65 = sphi 0, %s64
      %s81 = sphi 0, %s65
      %s87 = sphi 0, %s89
      %s90 = sphi 0, %s87
      %s91 = sphi 0, %s90
      %s107 = sphi 0, %s91
      %s113 = sphi 0, %s115
      %s116 = sphi 0, %s113
      %s117 = sphi 0, %s116
      %s133 = sphi 0, %s117
      %s137 = sphi 0, %s137
      %s139 = sphi 0, %s137
      %s140 = sphi 0, %s139
      %s154 = sphi 0, %s140
      %s160 = sphi 0, %s162
      %s163 = sphi 0, %s160
      %s164 = sphi 0, %s163
      %s180 = sphi 0, %s164
    $region4: #{gcn_forward.3} parent=1 // loop_header_branch
      %14 = sbr.rel (%p12) target = $region8
    $region5: #{gcn_forward.3} parent=1 // loop_body
      %s16 = ssub.s32 %s11, 1
      %s17 = ssub.s32 %s11, 2
      %s24 = sadd.s32 1, %s19
      %p25 = scmp.ge.s32.totalorder %s24, 3
      %s26 = scalar_select %p25, 0, %s24
      %s27 = sadd.s32 1, %s18
      %s28 = scalar_select %p25, %s27, %s18
      %p29 = scmp.ge.s32.totalorder %s28, 6
      %s30 = scalar_select %p29, 0, %s28
      %s31 = ssub.s32 %s18, %s30
      %s32 = ssub.s32 %s19, %s26
      %s33 = sor.u32 %s31, %s32
      %p34 = scmp.eq.s32.totalorder %s33, 0
      %s36 = sadd.s32 %s35, 1
      %s37 = scalar_select %p34, %s35, %s36
      %p40 = pneg %p34
      %p41 = scmp.eq.s32.totalorder %s11, 17
      %p42 = por %p40, %p41
      %p43 = scmp.ne.s32.totalorder %s35, %s38
      %p44 = scmp.eq.s32.totalorder %s11, 0
      %p45 = por %p43, %p44
      %p46 = scmp.ne.s32.totalorder %s35, %s38
      %p47 = scmp.eq.s32.totalorder %s16, 17
      %p48 = por %p46, %p47
      %p49 = scmp.ne.s32.totalorder %s38, %s39
      %p50 = scmp.eq.s32.totalorder %s16, 0
      %p51 = por %p49, %p50
      %p52 = scmp.ne.s32.totalorder %s38, %s39
      %p53 = scmp.eq.s32.totalorder %s17, 17
      %p54 = por %p52, %p53
      %p56 = scmp.ne.s32.totalorder %s39, %s55
      %p57 = scmp.eq.s32.totalorder %s17, 0
      %p58 = por %p56, %p57
      %s59 = ssub.s32 %s19, %s26
      %p60 = scmp.eq.s32.totalorder %s59, 0
      %s62 = sadd.s32 %s61, 1
      %s63 = scalar_select %p60, %s61, %s62
      %p66 = pneg %p60
      %p67 = scmp.eq.s32.totalorder %s11, 17
      %p68 = por %p66, %p67
      %p69 = scmp.ne.s32.totalorder %s61, %s64
      %p70 = scmp.eq.s32.totalorder %s11, 0
      %p71 = por %p69, %p70
      %p72 = scmp.ne.s32.totalorder %s61, %s64
      %p73 = scmp.eq.s32.totalorder %s16, 17
      %p74 = por %p72, %p73
      %p75 = scmp.ne.s32.totalorder %s64, %s65
      %p76 = scmp.eq.s32.totalorder %s16, 0
      %p77 = por %p75, %p76
      %p78 = scmp.ne.s32.totalorder %s64, %s65
      %p79 = scmp.eq.s32.totalorder %s17, 17
      %p80 = por %p78, %p79
      %p82 = scmp.ne.s32.totalorder %s65, %s81
      %p83 = scmp.eq.s32.totalorder %s17, 0
      %p84 = por %p82, %p83
      %s85 = ssub.s32 %s18, %s30
      %p86 = scmp.eq.s32.totalorder %s85, 0
      %s88 = sadd.s32 %s87, 1
      %s89 = scalar_select %p86, %s87, %s88
      %p92 = pneg %p86
      %p93 = scmp.eq.s32.totalorder %s11, 17
      %p94 = por %p92, %p93
      %p95 = scmp.ne.s32.totalorder %s87, %s90
      %p96 = scmp.eq.s32.totalorder %s11, 0
      %p97 = por %p95, %p96
      %p98 = scmp.ne.s32.totalorder %s87, %s90
      %p99 = scmp.eq.s32.totalorder %s16, 17
      %p100 = por %p98, %p99
      %p101 = scmp.ne.s32.totalorder %s90, %s91
      %p102 = scmp.eq.s32.totalorder %s16, 0
      %p103 = por %p101, %p102
      %p104 = scmp.ne.s32.totalorder %s90, %s91
      %p105 = scmp.eq.s32.totalorder %s17, 17
      %p106 = por %p104, %p105
      %p108 = scmp.ne.s32.totalorder %s91, %s107
      %p109 = scmp.eq.s32.totalorder %s17, 0
      %p110 = por %p108, %p109
      %s111 = ssub.s32 %s18, %s30
      %p112 = scmp.eq.s32.totalorder %s111, 0
      %s114 = sadd.s32 %s113, 1
      %s115 = scalar_select %p112, %s113, %s114
      %p118 = pneg %p112
      %p119 = scmp.eq.s32.totalorder %s11, 17
      %p120 = por %p118, %p119
      %p121 = scmp.ne.s32.totalorder %s113, %s116
      %p122 = scmp.eq.s32.totalorder %s11, 0
      %p123 = por %p121, %p122
      %p124 = scmp.ne.s32.totalorder %s113, %s116
      %p125 = scmp.eq.s32.totalorder %s16, 17
      %p126 = por %p124, %p125
      %p127 = scmp.ne.s32.totalorder %s116, %s117
      %p128 = scmp.eq.s32.totalorder %s16, 0
      %p129 = por %p127, %p128
      %p130 = scmp.ne.s32.totalorder %s116, %s117
      %p131 = scmp.eq.s32.totalorder %s17, 17
      %p132 = por %p130, %p131
      %p134 = scmp.ne.s32.totalorder %s117, %s133
      %p135 = scmp.eq.s32.totalorder %s17, 0
      %p136 = por %p134, %p135
      %s138 = sadd.s32 %s137, 1
      %p141 = scmp.eq.s32.totalorder %s11, 17
      %p142 = scmp.ne.s32.totalorder %s137, %s139
      %p143 = scmp.eq.s32.totalorder %s11, 0
      %p144 = por %p142, %p143
      %p145 = scmp.ne.s32.totalorder %s137, %s139
      %p146 = scmp.eq.s32.totalorder %s16, 17
      %p147 = por %p145, %p146
      %p148 = scmp.ne.s32.totalorder %s139, %s140
      %p149 = scmp.eq.s32.totalorder %s16, 0
      %p150 = por %p148, %p149
      %p151 = scmp.ne.s32.totalorder %s139, %s140
      %p152 = scmp.eq.s32.totalorder %s17, 17
      %p153 = por %p151, %p152
      %p155 = scmp.ne.s32.totalorder %s140, %s154
      %p156 = scmp.eq.s32.totalorder %s17, 0
      %p157 = por %p155, %p156
      %s158 = ssub.s32 %s18, %s30
      %p159 = scmp.eq.s32.totalorder %s158, 0
      %s161 = sadd.s32 %s160, 1
      %s162 = scalar_select %p159, %s160, %s161
      %p165 = pneg %p159
      %p166 = scmp.eq.s32.totalorder %s11, 17
      %p167 = por %p165, %p166
      %p168 = scmp.ne.s32.totalorder %s160, %s163
      %p169 = scmp.eq.s32.totalorder %s11, 0
      %p170 = por %p168, %p169
      %p171 = scmp.ne.s32.totalorder %s160, %s163
      %p172 = scmp.eq.s32.totalorder %s16, 17
      %p173 = por %p171, %p172
      %p174 = scmp.ne.s32.totalorder %s163, %s164
      %p175 = scmp.eq.s32.totalorder %s16, 0
      %p176 = por %p174, %p175
      %p177 = scmp.ne.s32.totalorder %s163, %s164
      %p178 = scmp.eq.s32.totalorder %s17, 17
      %p179 = por %p177, %p178
      %p181 = scmp.ne.s32.totalorder %s164, %s180
      %p182 = scmp.eq.s32.totalorder %s17, 0
      %p183 = por %p181, %p182
      %p184 = scmp.le.s32.totalorder 1, %s11
      %p185 = scmp.lt.s32.totalorder %s11, 19
      %p186 = pnand %p184, %p185
      %p187 = pneg %p186
      // Predicated region
      $region9: #{gcn_forward.3} parent=5 // pred_check
        _
      $region10: #{gcn_forward.3} parent=5 // pred_check_branch
        %189 = sbr.rel (%p186) target = $region12
      $region11: #{gcn_forward.3} parent=5 // pred_region
        %s190 = ssub.s32 %s11, 1
        // Predicated region
        $region13: #{gcn_forward.3} parent=11 // pred_check
          %p191 = pneg %p150
        $region14: #{gcn_forward.3} parent=11 // pred_check_branch
          %193 = sbr.rel (%p191) target = $region16
        $region15: #{gcn_forward.3} parent=11 // pred_region
          _
        $region16: #{gcn_forward.3} parent=11 // pred_fallthru
          _
      $region12: #{gcn_forward.3} parent=5 // pred_fallthru
        _
      %p194 = scmp.lt.s32.totalorder %s11, 18
      // Predicated region
      $region17: #{gcn_forward.3} parent=5 // pred_check
        %p195 = pneg %p194
      $region18: #{gcn_forward.3} parent=5 // pred_check_branch
        %197 = sbr.rel (%p195) target = $region20
      $region19: #{gcn_forward.3} parent=5 // pred_region
        // Predicated region
        $region21: #{gcn_forward.3} parent=19 // pred_check
          %p198 = pneg %p45
        $region22: #{gcn_forward.3} parent=19 // pred_check_branch
          %200 = sbr.rel (%p198) target = $region24
        $region23: #{gcn_forward.3} parent=19 // pred_region
          %s201 = sand.u32 %s35, 1
          %s202 = sand.u32 %s35, 1
          %s203 = smul.addr %s202, 32
          %s204 = scalar_lea.vmem [#allocation3], %s203
          %s205 = smul.u32 8, %s18
          %s206 = smul.addr %s205, 3
          %s207 = sadd.s32 %s19, %s206
          %s208 = smul.addr %s207, 4
          %s209 = scalar_lea.vmem %s0, %s208
          // Predicated region
          $region25: #{gcn_forward.3} parent=23 // pred_check
            _
          $region26: #{gcn_forward.3} parent=23 // pred_check_branch
            %211 = sbr.rel (0) target = $region28
          $region27: #{gcn_forward.3} parent=23 // pred_region
            // Predicated region
            $region29: #{gcn_forward.3} parent=27 // pred_check
              _
            $region30: #{gcn_forward.3} parent=27 // pred_check_branch
              %213 = sbr.rel target = $region32
            $region31: #{gcn_forward.3} parent=27 // pred_region
              // Predicated region
              $region44: #{gcn_forward.3} parent=31 // pred_check
                _
              $region45: #{gcn_forward.3} parent=31 // pred_check_branch
                %243 = sbr.rel (0) target = $region47
              $region46: #{gcn_forward.3} parent=31 // pred_region
                loop: start=0, step=1, limit=1
                $region48: #{gcn_forward.3} parent=46 // loop_pre_header
                  _
                $region49: #{gcn_forward.3} parent=46 // loop_header
                  %s245 = sphi 0, %s249
                  %p246 = scmp.ge.s32.totalorder %s245, 1
                  %s250 = sphi %s209, %s209
                  %s251 = sphi %s204, %s204
                $region50: #{gcn_forward.3} parent=46 // loop_header_branch
                  %248 = sbr.rel (%p246) target = $region54
                $region51: #{gcn_forward.3} parent=46 // loop_body
                  _
                $region52: #{gcn_forward.3} parent=46 // loop_footer
                  %s249 = sadd.s32 1, %s245
                $region53: #{gcn_forward.3} parent=46 // loop_footer_branch
                  %244 = sbr.rel target = $region49
                $region54: #{gcn_forward.3} parent=46 // loop_exit
                  _
                %s253 = ssub.s32 16, 1
                loop: start=0, step=1, limit=1
                $region55: #{gcn_forward.3} parent=46 // loop_pre_header
                  _
                $region56: #{gcn_forward.3} parent=46 // loop_header
                  %s255 = sphi 0, %s259
                  %p256 = scmp.ge.s32.totalorder %s255, 1
                  %s260 = sphi %s209, %s209
                  %s261 = sphi %s204, %s204
                $region57: #{gcn_forward.3} parent=46 // loop_header_branch
                  %258 = sbr.rel (%p256) target = $region61
                $region58: #{gcn_forward.3} parent=46 // loop_body
                  %v262 = vld [vmem:[%s260] sm:%s253]
                  %263 = vst [vmem:[%s261] sm:%s253] %v262
                  %v264 = vld [vmem:[%s260 + $0xc] sm:%s253]
                  %265 = vst [vmem:[%s261 + $0x4] sm:%s253] %v264
                  %v266 = vld [vmem:[%s260 + $0x18] sm:%s253]
                  %267 = vst [vmem:[%s261 + $0x8] sm:%s253] %v266
                  %v268 = vld [vmem:[%s260 + $0x24] sm:%s253]
                  %269 = vst [vmem:[%s261 + $0xc] sm:%s253] %v268
                  %v270 = vld [vmem:[%s260 + $0x30] sm:%s253]
                  %271 = vst [vmem:[%s261 + $0x10] sm:%s253] %v270
                  %v272 = vld [vmem:[%s260 + $0x3c] sm:%s253]
                  %273 = vst [vmem:[%s261 + $0x14] sm:%s253] %v272
                  %v274 = vld [vmem:[%s260 + $0x48] sm:%s253]
                  %275 = vst [vmem:[%s261 + $0x18] sm:%s253] %v274
                  %v276 = vld [vmem:[%s260 + $0x54] sm:%s253]
                  %277 = vst [vmem:[%s261 + $0x1c] sm:%s253] %v276
                $region59: #{gcn_forward.3} parent=46 // loop_footer
                  %s259 = sadd.s32 1, %s255
                $region60: #{gcn_forward.3} parent=46 // loop_footer_branch
                  %254 = sbr.rel target = $region56
                $region61: #{gcn_forward.3} parent=46 // loop_exit
                  _
              $region47: #{gcn_forward.3} parent=31 // pred_fallthru
                _
            $region32: #{gcn_forward.3} parent=27 // pred_fallthru
              _
            // Predicated region
            $region33: #{gcn_forward.3} parent=27 // pred_check
              _
            $region34: #{gcn_forward.3} parent=27 // pred_check_branch
              %215 = sbr.rel (0) target = $region36
            $region35: #{gcn_forward.3} parent=27 // pred_region
              %s217 = ssub.s32 16, 1
              loop: start=0, step=1, limit=1
              $region37: #{gcn_forward.3} parent=35 // loop_pre_header
                _
              $region38: #{gcn_forward.3} parent=35 // loop_header
                %s219 = sphi 0, %s223
                %p220 = scmp.ge.s32.totalorder %s219, 1
                %s224 = sphi %s209, %s209
                %s225 = sphi %s204, %s204
              $region39: #{gcn_forward.3} parent=35 // loop_header_branch
                %222 = sbr.rel (%p220) target = $region43
              $region40: #{gcn_forward.3} parent=35 // loop_body
                %v226 = vld [vmem:[%s224] sm:%s217]
                %227 = vst [vmem:[%s225] sm:%s217] %v226
                %v228 = vld [vmem:[%s224 + $0xc] sm:%s217]
                %229 = vst [vmem:[%s225 + $0x4] sm:%s217] %v228
                %v230 = vld [vmem:[%s224 + $0x18] sm:%s217]
                %231 = vst [vmem:[%s225 + $0x8] sm:%s217] %v230
                %v232 = vld [vmem:[%s224 + $0x24] sm:%s217]
                %233 = vst [vmem:[%s225 + $0xc] sm:%s217] %v232
                %v234 = vld [vmem:[%s224 + $0x30] sm:%s217]
                %235 = vst [vmem:[%s225 + $0x10] sm:%s217] %v234
                %v236 = vld [vmem:[%s224 + $0x3c] sm:%s217]
                %237 = vst [vmem:[%s225 + $0x14] sm:%s217] %v236
                %v238 = vld [vmem:[%s224 + $0x48] sm:%s217]
                %239 = vst [vmem:[%s225 + $0x18] sm:%s217] %v238
                %v240 = vld [vmem:[%s224 + $0x54] sm:%s217]
                %241 = vst [vmem:[%s225 + $0x1c] sm:%s217] %v240
              $region41: #{gcn_forward.3} parent=35 // loop_footer
                %s223 = sadd.s32 1, %s219
              $region42: #{gcn_forward.3} parent=35 // loop_footer_branch
                %218 = sbr.rel target = $region38
              $region43: #{gcn_forward.3} parent=35 // loop_exit
                _
            $region36: #{gcn_forward.3} parent=27 // pred_fallthru
              _
          $region28: #{gcn_forward.3} parent=23 // pred_fallthru
            _
          %278 = vnop
        $region24: #{gcn_forward.3} parent=19 // pred_fallthru
          _
        // Predicated region
        $region62: #{gcn_forward.3} parent=19 // pred_check
          %p279 = pneg %p71
        $region63: #{gcn_forward.3} parent=19 // pred_check_branch
          %281 = sbr.rel (%p279) target = $region65
        $region64: #{gcn_forward.3} parent=19 // pred_region
          %s282 = smul.u32 16, %s19
          %p283 = scmp.lt.s32.totalorder %s282, 47
          %s284 = scalar_select %p283, %s282, 47
          %s285 = smul.addr %s284, 4
          %s286 = scalar_lea.vmem %s1, %s285
          %s287 = smul.u32 16, %s19
        $region65: #{gcn_forward.3} parent=19 // pred_fallthru
          _
        // Predicated region
        $region66: #{gcn_forward.3} parent=19 // pred_check
          %p288 = pneg %p97
        $region67: #{gcn_forward.3} parent=19 // pred_check_branch
          %290 = sbr.rel (%p288) target = $region69
        $region68: #{gcn_forward.3} parent=19 // pred_region
          %s291 = smul.u32 8, %s18
          %p292 = scmp.lt.s32.totalorder %s291, 47
          %s293 = scalar_select %p292, %s291, 47
          %s294 = smul.addr %s293, 4
          %s295 = scalar_lea.vmem %s2, %s294
          %s296 = smul.u32 8, %s18
        $region69: #{gcn_forward.3} parent=19 // pred_fallthru
          _
        // Predicated region
        $region70: #{gcn_forward.3} parent=19 // pred_check
          %p297 = pneg %p123
        $region71: #{gcn_forward.3} parent=19 // pred_check_branch
          %299 = sbr.rel (%p297) target = $region73
        $region72: #{gcn_forward.3} parent=19 // pred_region
          %s300 = smul.u32 8, %s18
          %p301 = scmp.lt.s32.totalorder %s300, 47
          %s302 = scalar_select %p301, %s300, 47
          %s303 = smul.addr %s302, 8
          %s304 = scalar_lea.vmem %s3, %s303
          %s305 = smul.u32 8, %s18
        $region73: #{gcn_forward.3} parent=19 // pred_fallthru
          _
      $region20: #{gcn_forward.3} parent=5 // pred_fallthru
        _
      %p306 = scmp.le.s32.totalorder 1, %s11
      %p307 = scmp.lt.s32.totalorder %s11, 19
      %p308 = pnand %p306, %p307
      %p309 = pneg %p308
      // Predicated region
      $region74: #{gcn_forward.3} parent=5 // pred_check
        _
      $region75: #{gcn_forward.3} parent=5 // pred_check_branch
        %311 = sbr.rel (%p308) target = $region77
      $region76: #{gcn_forward.3} parent=5 // pred_region
        %s312 = ssub.s32 %s11, 1
        %s313 = sand.u32 %s38, 1
        %s314 = sand.u32 %s38, 1
        %s315 = smul.addr %s314, 32
        %s316 = scalar_lea.vmem [#allocation3], %s315
        // Predicated region
        $region78: #{gcn_forward.3} parent=76 // pred_check
          %p317 = pneg %p51
        $region79: #{gcn_forward.3} parent=76 // pred_check_branch
          %319 = sbr.rel (%p317) target = $region81
        $region80: #{gcn_forward.3} parent=76 // pred_region
          _
        $region81: #{gcn_forward.3} parent=76 // pred_fallthru
          _
        %s320 = sand.u32 %s38, 1
        %s321 = sand.u32 %s38, 1
        %s322 = smul.addr %s321, 32
        %s323 = scalar_lea.vmem [#allocation3], %s322
        %p324 = pneg %p51
        %p325 = pneg %p48
        %s326 = smul.u32 16, %s21
        %p327 = scmp.lt.s32.totalorder %s326, 47
        %s328 = scalar_select %p327, %s326, 47
        %s329 = smul.addr %s328, 4
        %s330 = scalar_lea.vmem %s1, %s329
        %p331 = pneg %p77
        %p332 = pneg %p74
        %s333 = smul.u32 8, %s20
        %p334 = scmp.lt.s32.totalorder %s333, 47
        %s335 = scalar_select %p334, %s333, 47
        %s336 = smul.addr %s335, 4
        %s337 = scalar_lea.vmem %s2, %s336
        %p338 = pneg %p103
        %p339 = pneg %p100
        %s340 = smul.u32 8, %s20
        %p341 = scmp.lt.s32.totalorder %s340, 47
        %s342 = scalar_select %p341, %s340, 47
        %s343 = smul.addr %s342, 8
        %s344 = scalar_lea.vmem %s3, %s343
        %p345 = pneg %p129
        %p346 = pneg %p126
        %p347 = pneg %p150
        %p348 = pneg %p147
        %p349 = pneg %p176
        %p350 = pneg %p173
        %s351 = smul.u32 8, %s20
        %p352 = scmp.lt.s32.totalorder %s351, 47
        %s353 = scalar_select %p352, %s351, 47
        %s354 = smul.addr %s353, 8
        %s355 = scalar_lea.vmem %s5, %s354
        %s356 = smul.u32 8, %s20
        %s357 = smul.u32 16, %s21
        %p358 = scmp.lt.s32.totalorder %s357, 47
        %s359 = scalar_select %p358, %s357, 47
        %s360 = smul.addr %s359, 4
        %s361 = scalar_lea.vmem %s1, %s360
        %s362 = smul.u32 16, %s21
        %s363 = smul.u32 8, %s20
        %p364 = scmp.lt.s32.totalorder %s363, 47
        %s365 = scalar_select %p364, %s363, 47
        %s366 = smul.addr %s365, 4
        %s367 = scalar_lea.vmem %s2, %s366
        %s368 = smul.u32 8, %s20
        %s369 = smul.u32 8, %s20
        %p370 = scmp.lt.s32.totalorder %s369, 47
        %s371 = scalar_select %p370, %s369, 47
        %s372 = smul.addr %s371, 8
        %s373 = scalar_lea.vmem %s3, %s372
        %s374 = smul.u32 8, %s20
        %s375 = smul.u32 8, %s20
        %p376 = scmp.lt.s32.totalorder %s375, 47
        %s377 = scalar_select %p376, %s375, 47
        %s378 = smul.addr %s377, 8
        %s379 = scalar_lea.vmem %s5, %s378
        %s380 = smul.u32 8, %s20
        %p382 = scmp.eq.s32.totalorder %s21, 0
        // Predicated region
        $region82: #{gcn_forward.3} parent=76 // pred_check
          %p383 = pneg %p382
        $region83: #{gcn_forward.3} parent=76 // pred_check_branch
          %385 = sbr.rel (%p383) target = $region85
        $region84: #{gcn_forward.3} parent=76 // pred_region
          %386 = vst [vmem:[#allocation2] sm:$0xff] 0.0
          %387 = vst [vmem:[#allocation2 + $0x8] sm:$0xff] 0.0
          %388 = vst [vmem:[#allocation2 + $0x10] sm:$0xff] 0.0
          %389 = vst [vmem:[#allocation2 + $0x18] sm:$0xff] 0.0
          %390 = vst [vmem:[#allocation2 + $0x20] sm:$0xff] 0.0
          %391 = vst [vmem:[#allocation2 + $0x28] sm:$0xff] 0.0
          %392 = vst [vmem:[#allocation2 + $0x30] sm:$0xff] 0.0
          %393 = vst [vmem:[#allocation2 + $0x38] sm:$0xff] 0.0
        $region85: #{gcn_forward.3} parent=76 // pred_fallthru
          _
        %v394 = vld [vmem:[#allocation2] sm:$0xff]
        %v395 = vld [vmem:[#allocation2 + $0x8] sm:$0xff]
        %v396 = vld [vmem:[#allocation2 + $0x10] sm:$0xff]
        %v397 = vld [vmem:[#allocation2 + $0x18] sm:$0xff]
        %v398 = vld [vmem:[#allocation2 + $0x20] sm:$0xff]
        %v399 = vld [vmem:[#allocation2 + $0x28] sm:$0xff]
        %v400 = vld [vmem:[#allocation2 + $0x30] sm:$0xff]
        %v401 = vld [vmem:[#allocation2 + $0x38] sm:$0xff]
        %v402 = vld [vmem:[%s316] sm:$0xf]
        %v403 = vld [vmem:[%s316 + $0x4] sm:$0xf]
        %v404 = vld [vmem:[%s316 + $0x8] sm:$0xf]
        %v405 = vld [vmem:[%s316 + $0xc] sm:$0xf]
        %v406 = vld [vmem:[%s316 + $0x10] sm:$0xf]
        %v407 = vld [vmem:[%s316 + $0x14] sm:$0xf]
        %v408 = vld [vmem:[%s316 + $0x18] sm:$0xf]
        %v409 = vld [vmem:[%s316 + $0x1c] sm:$0xf]
        %v410 = vld [vmem:[%s361] sm:$0xf]
        %v411 = vld [vmem:[%s361 + $0x4] sm:$0xf]
        %v412 = vld [vmem:[%s361 + $0x8] sm:$0xf]
        %v413 = vld [vmem:[%s361 + $0xc] sm:$0xf]
        %v414 = vld [vmem:[%s361 + $0x10] sm:$0xf]
        %v415 = vld [vmem:[%s361 + $0x14] sm:$0xf]
        %v416 = vld [vmem:[%s361 + $0x18] sm:$0xf]
        %v417 = vld [vmem:[%s361 + $0x1c] sm:$0xf]
        %v418 = vld [vmem:[%s361 + $0x20] sm:$0xf]
        %v419 = vld [vmem:[%s361 + $0x24] sm:$0xf]
        %v420 = vld [vmem:[%s361 + $0x28] sm:$0xf]
        %v421 = vld [vmem:[%s361 + $0x2c] sm:$0xf]
        %v422 = vld [vmem:[%s361 + $0x30] sm:$0xf]
        %v423 = vld [vmem:[%s361 + $0x34] sm:$0xf]
        %v424 = vld [vmem:[%s361 + $0x38] sm:$0xf]
        %v425 = vld [vmem:[%s361 + $0x3c] sm:$0xf]
        %v434 = vunpack.c.l.b16 %v402
        %v435 = vunpack.c.l.b16 %v403
        %v436 = vunpack.c.l.b16 %v404
        %v437 = vunpack.c.l.b16 %v405
        %v438 = vunpack.c.l.b16 %v406
        %v439 = vunpack.c.l.b16 %v407
        %v440 = vunpack.c.l.b16 %v408
        %v441 = vunpack.c.l.b16 %v409
        %v442 = vpack.c.b16 %v435, %v434
        %v443 = vpack.c.b16 %v437, %v436
        %v444 = vpack.c.b16 %v439, %v438
        %v445 = vpack.c.b16 %v441, %v440
        %v466 = vunpack.c.l.b16 %v410
        %v467 = vunpack.c.l.b16 %v411
        %v468 = vunpack.c.l.b16 %v412
        %v469 = vunpack.c.l.b16 %v413
        %v470 = vunpack.c.l.b16 %v414
        %v471 = vunpack.c.l.b16 %v415
        %v472 = vunpack.c.l.b16 %v416
        %v473 = vunpack.c.l.b16 %v417
        %v474 = vunpack.c.l.b16 %v418
        %v475 = vunpack.c.l.b16 %v419
        %v476 = vunpack.c.l.b16 %v420
        %v477 = vunpack.c.l.b16 %v421
        %v478 = vunpack.c.l.b16 %v422
        %v479 = vunpack.c.l.b16 %v423
        %v480 = vunpack.c.l.b16 %v424
        %v481 = vunpack.c.l.b16 %v425
        %v482 = vpack.c.b16 %v467, %v466
        %v483 = vpack.c.b16 %v469, %v468
        %v484 = vpack.c.b16 %v471, %v470
        %v485 = vpack.c.b16 %v473, %v472
        %v486 = vpack.c.b16 %v475, %v474
        %v487 = vpack.c.b16 %v477, %v476
        %v488 = vpack.c.b16 %v479, %v478
        %v489 = vpack.c.b16 %v481, %v480
        %498 = vmatprep.subr.bf16.mxu0 0
        %499 = vmatpush1.bf16.msra.mxu0 %v489
        %500 = vmatprep.subr.bf16.mxu0 0
        %501 = vmatpush1.bf16.msra.mxu0 %v488
        %502 = vmatprep.subr.bf16.mxu0 0
        %503 = vmatpush1.bf16.msra.mxu0 %v487
        %504 = vmatprep.subr.bf16.mxu0 0
        %505 = vmatpush1.bf16.msra.mxu0 %v486
        %506 = vmatprep.subr.bf16.mxu0 0
        %507 = vmatpush1.bf16.msra.mxu0 %v485
        %508 = vmatprep.subr.bf16.mxu0 0
        %509 = vmatpush1.bf16.msra.mxu0 %v484
        %510 = vmatprep.subr.bf16.mxu0 0
        %511 = vmatpush1.bf16.msra.mxu0 %v483
        %512 = vmatprep.subr.bf16.mxu0 0
        %513 = vmatpush1.bf16.msra.mxu0 %v482
        %514 = vmatprep.subr.bf16.mxu0 0
        %515 = vmatpush2.bf16.msra.mxu0 0
        %516 = vmatprep.subr.bf16.mxu0 0
        %517 = vmatpush2.bf16.msra.mxu0 0
        %518 = vmatprep.subr.bf16.mxu0 0
        %519 = vmatpush2.bf16.msra.mxu0 0
        %520 = vmatprep.subr.bf16.mxu0 0
        %521 = vmatpush2.bf16.msra.mxu0 0
        %522 = vmatprep.subr.bf16.mxu0 0
        %523 = vmatpush2.bf16.msra.mxu0 0
        %524 = vmatprep.subr.bf16.mxu0 0
        %525 = vmatpush2.bf16.msra.mxu0 0
        %526 = vmatprep.subr.bf16.mxu0 0
        %527 = vmatpush2.bf16.msra.mxu0 0
        %528 = vmatprep.subr.bf16.mxu0 0
        %529 = vmatpush2.bf16.msra.mxu0 0
        %530 = vmatprep.mubr.bf16.mxu0 0
        %531 = vmatmul.mubr.bf16.gmra.mxu0 %v442
        %v532 = vpop.f32.mrf.mxu0
        %v533 = vadd.f32 0.0, %v532
        %v534 = vpop.f32.mrf.mxu0
        %v535 = vpop.f32.mrf.mxu0
        %v536 = vadd.f32 0.0, %v535
        %v537 = vpop.f32.mrf.mxu0
        %538 = vmatprep.mubr.bf16.mxu0 0
        %539 = vmatmul.mubr.bf16.gmra.mxu0 %v443
        %v540 = vpop.f32.mrf.mxu0
        %v541 = vadd.f32 0.0, %v540
        %v542 = vpop.f32.mrf.mxu0
        %v543 = vpop.f32.mrf.mxu0
        %v544 = vadd.f32 0.0, %v543
        %v545 = vpop.f32.mrf.mxu0
        %546 = vmatprep.mubr.bf16.mxu0 0
        %547 = vmatmul.mubr.bf16.gmra.mxu0 %v444
        %v548 = vpop.f32.mrf.mxu0
        %v549 = vadd.f32 0.0, %v548
        %v550 = vpop.f32.mrf.mxu0
        %v551 = vpop.f32.mrf.mxu0
        %v552 = vadd.f32 0.0, %v551
        %v553 = vpop.f32.mrf.mxu0
        %554 = vmatprep.mubr.bf16.mxu0 0
        %555 = vmatmul.mubr.bf16.gmra.mxu0 %v445
        %v556 = vpop.f32.mrf.mxu0
        %v557 = vadd.f32 0.0, %v556
        %v558 = vpop.f32.mrf.mxu0
        %v559 = vpop.f32.mrf.mxu0
        %v560 = vadd.f32 0.0, %v559
        %v561 = vpop.f32.mrf.mxu0
        %562 = vdwg.mxu0
        %v563 = vadd.f32 %v394, %v533
        %v564 = vadd.f32 %v395, %v536
        %v565 = vadd.f32 %v396, %v541
        %v566 = vadd.f32 %v397, %v544
        %v567 = vadd.f32 %v398, %v549
        %v568 = vadd.f32 %v399, %v552
        %v569 = vadd.f32 %v400, %v557
        %v570 = vadd.f32 %v401, %v560
        %571 = vst [vmem:[#allocation2] sm:$0xff] %v563
        %572 = vst [vmem:[#allocation2 + $0x8] sm:$0xff] %v564
        %573 = vst [vmem:[#allocation2 + $0x10] sm:$0xff] %v565
        %574 = vst [vmem:[#allocation2 + $0x18] sm:$0xff] %v566
        %575 = vst [vmem:[#allocation2 + $0x20] sm:$0xff] %v567
        %576 = vst [vmem:[#allocation2 + $0x28] sm:$0xff] %v568
        %577 = vst [vmem:[#allocation2 + $0x30] sm:$0xff] %v569
        %578 = vst [vmem:[#allocation2 + $0x38] sm:$0xff] %v570
        %p579 = scmp.eq.s32.totalorder %s21, 2
        // Predicated region
        $region86: #{gcn_forward.3} parent=76 // pred_check
          %p580 = pneg %p579
        $region87: #{gcn_forward.3} parent=76 // pred_check_branch
          %582 = sbr.rel (%p580) target = $region89
        $region88: #{gcn_forward.3} parent=76 // pred_region
          %v583 = vld [vmem:[%s373] sm:$0xff]
          %v584 = vld [vmem:[%s373 + $0x8] sm:$0xff]
          %v585 = vld [vmem:[%s373 + $0x10] sm:$0xff]
          %v586 = vld [vmem:[%s373 + $0x18] sm:$0xff]
          %v587 = vld [vmem:[%s373 + $0x20] sm:$0xff]
          %v588 = vld [vmem:[%s373 + $0x28] sm:$0xff]
          %v589 = vld [vmem:[%s373 + $0x30] sm:$0xff]
          %v590 = vld [vmem:[%s373 + $0x38] sm:$0xff]
          %v591 = vld [vmem:[#allocation2] sm:$0xff]
          %v592 = vld [vmem:[#allocation2 + $0x8] sm:$0xff]
          %v593 = vld [vmem:[#allocation2 + $0x10] sm:$0xff]
          %v594 = vld [vmem:[#allocation2 + $0x18] sm:$0xff]
          %v595 = vld [vmem:[#allocation2 + $0x20] sm:$0xff]
          %v596 = vld [vmem:[#allocation2 + $0x28] sm:$0xff]
          %v597 = vld [vmem:[#allocation2 + $0x30] sm:$0xff]
          %v598 = vld [vmem:[#allocation2 + $0x38] sm:$0xff]
          %v599 = vld [vmem:[%s367] sm:$0xf]
          %v600 = vld [vmem:[%s367 + $0x4] sm:$0xf]
          %v601 = vld [vmem:[%s367 + $0x8] sm:$0xf]
          %v602 = vld [vmem:[%s367 + $0xc] sm:$0xf]
          %v603 = vld [vmem:[%s367 + $0x10] sm:$0xf]
          %v604 = vld [vmem:[%s367 + $0x14] sm:$0xf]
          %v605 = vld [vmem:[%s367 + $0x18] sm:$0xf]
          %v606 = vld [vmem:[%s367 + $0x1c] sm:$0xf]
          %v607 = vunpack.c.l.bf16 %v599
          %v608 = vunpack.c.l.bf16 %v600
          %v609 = vunpack.c.l.bf16 %v601
          %v610 = vunpack.c.l.bf16 %v602
          %v611 = vunpack.c.l.bf16 %v603
          %v612 = vunpack.c.l.bf16 %v604
          %v613 = vunpack.c.l.bf16 %v605
          %v614 = vunpack.c.l.bf16 %v606
          %616 = vset.pattern.permute.xlu0 0
          %617 = vperm.xlu0 %616, %v583
          %v618 = vpop.permute.xlu0 %617
          %621 = vset.pattern.permute.xlu0 0
          %622 = vperm.xlu0 %621, %v584
          %v623 = vpop.permute.xlu0 %622
          %626 = vset.pattern.permute.xlu0 0
          %627 = vperm.xlu0 %626, %v585
          %v628 = vpop.permute.xlu0 %627
          %631 = vset.pattern.permute.xlu0 0
          %632 = vperm.xlu0 %631, %v586
          %v633 = vpop.permute.xlu0 %632
          %636 = vset.pattern.permute.xlu0 0
          %637 = vperm.xlu0 %636, %v587
          %v638 = vpop.permute.xlu0 %637
          %641 = vset.pattern.permute.xlu0 0
          %642 = vperm.xlu0 %641, %v588
          %v643 = vpop.permute.xlu0 %642
          %646 = vset.pattern.permute.xlu0 0
          %647 = vperm.xlu0 %646, %v589
          %v648 = vpop.permute.xlu0 %647
          %651 = vset.pattern.permute.xlu0 0
          %652 = vperm.xlu0 %651, %v590
          %v653 = vpop.permute.xlu0 %652
          %v655 = vmul.f32 %v618, %v607
          %v656 = vmul.f32 %v623, %v608
          %v657 = vmul.f32 %v628, %v609
          %v658 = vmul.f32 %v633, %v610
          %v659 = vmul.f32 %v638, %v611
          %v660 = vmul.f32 %v643, %v612
          %v661 = vmul.f32 %v648, %v613
          %v662 = vmul.f32 %v653, %v614
          %v663 = vadd.f32 %v591, %v655
          %v664 = vadd.f32 %v592, %v656
          %v665 = vadd.f32 %v593, %v657
          %v666 = vadd.f32 %v594, %v658
          %v667 = vadd.f32 %v595, %v659
          %v668 = vadd.f32 %v596, %v660
          %v669 = vadd.f32 %v597, %v661
          %v670 = vadd.f32 %v598, %v662
          %671 = vset.pattern.permute.xlu0 1
          %672 = vperm.xlu0 %671, %v583
          %v673 = vpop.permute.xlu0 %672
          %675 = vset.pattern.permute.xlu0 1
          %676 = vperm.xlu0 %675, %v584
          %v677 = vpop.permute.xlu0 %676
          %679 = vset.pattern.permute.xlu0 1
          %680 = vperm.xlu0 %679, %v585
          %v681 = vpop.permute.xlu0 %680
          %683 = vset.pattern.permute.xlu0 1
          %684 = vperm.xlu0 %683, %v586
          %v685 = vpop.permute.xlu0 %684
          %687 = vset.pattern.permute.xlu0 1
          %688 = vperm.xlu0 %687, %v587
          %v689 = vpop.permute.xlu0 %688
          %691 = vset.pattern.permute.xlu0 1
          %692 = vperm.xlu0 %691, %v588
          %v693 = vpop.permute.xlu0 %692
          %695 = vset.pattern.permute.xlu0 1
          %696 = vperm.xlu0 %695, %v589
          %v697 = vpop.permute.xlu0 %696
          %699 = vset.pattern.permute.xlu0 1
          %700 = vperm.xlu0 %699, %v590
          %v701 = vpop.permute.xlu0 %700
          %v703 = vmul.f32 %v663, %v673
          %v704 = vmul.f32 %v664, %v677
          %v705 = vmul.f32 %v665, %v681
          %v706 = vmul.f32 %v666, %v685
          %v707 = vmul.f32 %v667, %v689
          %v708 = vmul.f32 %v668, %v693
          %v709 = vmul.f32 %v669, %v697
          %v710 = vmul.f32 %v670, %v701
          %v711 = vld [vmem:[%s4] sm:$0x1]
          %v713 = vlaneseq
          %v714 = vshrl.u32 %v713, 7
          %v715 = vsub.s32 0, %v714
          %v716 = vrot.slane %v711, %v715
          %v718 = vadd.f32 %v703, %v716
          %v719 = vadd.f32 %v704, %v716
          %v720 = vadd.f32 %v705, %v716
          %v721 = vadd.f32 %v706, %v716
          %v722 = vadd.f32 %v707, %v716
          %v723 = vadd.f32 %v708, %v716
          %v724 = vadd.f32 %v709, %v716
          %v725 = vadd.f32 %v710, %v716
          %726 = vmax.xlane.f32.xlu0 %v718
          %v727 = vpop.xlane.xlu0 %726
          %728 = vmax.xlane.f32.xlu0 %v719
          %v729 = vpop.xlane.xlu0 %728
          %730 = vmax.xlane.f32.xlu0 %v720
          %v731 = vpop.xlane.xlu0 %730
          %732 = vmax.xlane.f32.xlu0 %v721
          %v733 = vpop.xlane.xlu0 %732
          %734 = vmax.xlane.f32.xlu0 %v722
          %v735 = vpop.xlane.xlu0 %734
          %736 = vmax.xlane.f32.xlu0 %v723
          %v737 = vpop.xlane.xlu0 %736
          %738 = vmax.xlane.f32.xlu0 %v724
          %v739 = vpop.xlane.xlu0 %738
          %740 = vmax.xlane.f32.xlu0 %v725
          %v741 = vpop.xlane.xlu0 %740
          %v742 = vsub.f32 %v718, %v727
          %v743 = vsub.f32 %v719, %v729
          %v744 = vsub.f32 %v720, %v731
          %v745 = vsub.f32 %v721, %v733
          %v746 = vsub.f32 %v722, %v735
          %v747 = vsub.f32 %v723, %v737
          %v748 = vsub.f32 %v724, %v739
          %v749 = vsub.f32 %v725, %v741
          %v750 = vmul.f32 %v742, 1.442695
          %v751 = vpow.pop %v750
          %v752 = vmul.f32 %v743, 1.442695
          %v753 = vpow.pop %v752
          %v754 = vmul.f32 %v744, 1.442695
          %v755 = vpow.pop %v754
          %v756 = vmul.f32 %v745, 1.442695
          %v757 = vpow.pop %v756
          %v758 = vmul.f32 %v746, 1.442695
          %v759 = vpow.pop %v758
          %v760 = vmul.f32 %v747, 1.442695
          %v761 = vpow.pop %v760
          %v762 = vmul.f32 %v748, 1.442695
          %v763 = vpow.pop %v762
          %v764 = vmul.f32 %v749, 1.442695
          %v765 = vpow.pop %v764
          %766 = vadd.xlane.f32.xlu0 %v751
          %v767 = vpop.xlane.xlu0 %766
          %768 = vadd.xlane.f32.xlu0 %v753
          %v769 = vpop.xlane.xlu0 %768
          %770 = vadd.xlane.f32.xlu0 %v755
          %v771 = vpop.xlane.xlu0 %770
          %772 = vadd.xlane.f32.xlu0 %v757
          %v773 = vpop.xlane.xlu0 %772
          %774 = vadd.xlane.f32.xlu0 %v759
          %v775 = vpop.xlane.xlu0 %774
          %776 = vadd.xlane.f32.xlu0 %v761
          %v777 = vpop.xlane.xlu0 %776
          %778 = vadd.xlane.f32.xlu0 %v763
          %v779 = vpop.xlane.xlu0 %778
          %780 = vadd.xlane.f32.xlu0 %v765
          %v781 = vpop.xlane.xlu0 %780
          %v782 = vlog2.pop %v767
          %v783 = vmul.f32 %v782, 0.6931472
          %v784 = vlog2.pop %v769
          %v785 = vmul.f32 %v784, 0.6931472
          %v786 = vlog2.pop %v771
          %v787 = vmul.f32 %v786, 0.6931472
          %v788 = vlog2.pop %v773
          %v789 = vmul.f32 %v788, 0.6931472
          %v790 = vlog2.pop %v775
          %v791 = vmul.f32 %v790, 0.6931472
          %v792 = vlog2.pop %v777
          %v793 = vmul.f32 %v792, 0.6931472
          %v794 = vlog2.pop %v779
          %v795 = vmul.f32 %v794, 0.6931472
          %v796 = vlog2.pop %v781
          %v797 = vmul.f32 %v796, 0.6931472
          %v798 = vsub.f32 %v742, %v783
          %v799 = vsub.f32 %v743, %v785
          %v800 = vsub.f32 %v744, %v787
          %v801 = vsub.f32 %v745, %v789
          %v802 = vsub.f32 %v746, %v791
          %v803 = vsub.f32 %v747, %v793
          %v804 = vsub.f32 %v748, %v795
          %v805 = vsub.f32 %v749, %v797
          %806 = vst [vmem:[%s379] sm:$0xff] %v798
          %807 = vst [vmem:[%s379 + $0x8] sm:$0xff] %v799
          %808 = vst [vmem:[%s379 + $0x10] sm:$0xff] %v800
          %809 = vst [vmem:[%s379 + $0x18] sm:$0xff] %v801
          %810 = vst [vmem:[%s379 + $0x20] sm:$0xff] %v802
          %811 = vst [vmem:[%s379 + $0x28] sm:$0xff] %v803
          %812 = vst [vmem:[%s379 + $0x30] sm:$0xff] %v804
          %813 = vst [vmem:[%s379 + $0x38] sm:$0xff] %v805
        $region89: #{gcn_forward.3} parent=76 // pred_fallthru
          _
        %s814 = smul.u32 8, %s20
        %p815 = scmp.lt.s32.totalorder %s814, 47
        %s816 = scalar_select %p815, %s814, 47
        %s817 = smul.addr %s816, 8
        %s818 = scalar_lea.vmem %s5, %s817
        // Predicated region
        $region90: #{gcn_forward.3} parent=76 // pred_check
          %p819 = pneg %p173
        $region91: #{gcn_forward.3} parent=76 // pred_check_branch
          %821 = sbr.rel (%p819) target = $region93
        $region92: #{gcn_forward.3} parent=76 // pred_region
          %s822 = smul.u32 8, %s20
        $region93: #{gcn_forward.3} parent=76 // pred_fallthru
          _
      $region77: #{gcn_forward.3} parent=5 // pred_fallthru
        _
      %p823 = scmp.le.s32.totalorder 2, %s11
      // Predicated region
      $region94: #{gcn_forward.3} parent=5 // pred_check
        %p824 = pneg %p823
      $region95: #{gcn_forward.3} parent=5 // pred_check_branch
        %826 = sbr.rel (%p824) target = $region97
      $region96: #{gcn_forward.3} parent=5 // pred_region
        %s827 = ssub.s32 %s11, 2
        // Predicated region
        $region98: #{gcn_forward.3} parent=96 // pred_check
          %p828 = pneg %p179
        $region99: #{gcn_forward.3} parent=96 // pred_check_branch
          %830 = sbr.rel (%p828) target = $region101
        $region100: #{gcn_forward.3} parent=96 // pred_region
          %s831 = smul.u32 8, %s22
          %p832 = scmp.lt.s32.totalorder %s831, 47
          %s833 = scalar_select %p832, %s831, 47
          %s834 = smul.addr %s833, 8
          %s835 = scalar_lea.vmem %s5, %s834
        $region101: #{gcn_forward.3} parent=96 // pred_fallthru
          _
      $region97: #{gcn_forward.3} parent=5 // pred_fallthru
        _
    $region6: #{gcn_forward.3} parent=1 // loop_footer
      %s15 = sadd.s32 1, %s11
    $region7: #{gcn_forward.3} parent=1 // loop_footer_branch
      %10 = sbr.rel target = $region3
    $region8: #{gcn_forward.3} parent=1 // loop_exit
      _

// kernel: gcn_forward.2
$region0: #{gcn_forward.2}
  #allocation0 [shape = 'u32[]', space=smem, size = 0x4, offset = 0x4, fixed_abs, tag = 'smem constant byte address 0x4 - core index']
  #allocation1 [shape = 'u32[144,128]{1,0:T(1,128)}', space=vmem, size = 0x12000, scoped, tag = 'internal scratch']
  #allocation2 [shape = 'f32[64,32]{1,0:T(8,128)}', space=vmem, size = 0x8000, scoped, tag = 'scratch operand']
  %s0 = inlined_call_operand.vmem [shape: bf16[384,384], index: 0, kind: input, shape index: {}]
  %s1 = inlined_call_operand.vmem [shape: bf16[384,32], index: 1, kind: input, shape index: {}, may-alias: {1,2}]
  %s2 = inlined_call_operand.vmem [shape: bf16[384,32], index: 2, kind: input, shape index: {}, may-alias: {1,2}]
  %s3 = inlined_call_operand.vmem [shape: f32[384,2], index: 3, kind: input, shape index: {}]
  %s4 = inlined_call_operand.vmem [shape: f32[1,32], index: 4, kind: input, shape index: {}]
  %s5 = inlined_call_operand.vmem [shape: bf16[32,128], index: 5, kind: input, shape index: {}]
  %s6 = inlined_call_operand.vmem [shape: bf16[384,128], index: 6, kind: output, shape index: {}]
  %s7 = sld [smem:[#allocation0]]
  $region106: #{gcn_forward.2} parent=0
    _
  %s9 = ssub.s32 1, %s7
  %s10 = scalar_select 0, %s9, %s7
  $region1: #{gcn_forward.2} parent=0
    #allocation3 [shape = 'u8[32768]{0}', space=vmem, size = 0x8000, scoped, tag = 'input window, operand 0']
    loop: start=0, step=1, limit=20
    $region2: #{gcn_forward.2} parent=1 // loop_pre_header
      _
    $region3: #{gcn_forward.2} parent=1 // loop_header
      %s12 = sphi 0, %s16
      %p13 = scmp.ge.s32.totalorder %s12, 20
      %s19 = sphi 0, %s31
      %s20 = sphi 0, %s27
      %s21 = sphi 0, %s19
      %s22 = sphi 0, %s20
      %s23 = sphi 0, %s21
      %s24 = sphi 0, %s22
      %s36 = sphi 0, %s38
      %s39 = sphi 0, %s36
      %s40 = sphi 0, %s39
      %s56 = sphi 0, %s40
      %s62 = sphi 0, %s64
      %s65 = sphi 0, %s62
      %s66 = sphi 0, %s65
      %s82 = sphi 0, %s66
      %s88 = sphi 0, %s90
      %s91 = sphi 0, %s88
      %s92 = sphi 0, %s91
      %s108 = sphi 0, %s92
      %s114 = sphi 0, %s116
      %s117 = sphi 0, %s114
      %s118 = sphi 0, %s117
      %s134 = sphi 0, %s118
      %s138 = sphi 0, %s138
      %s140 = sphi 0, %s138
      %s141 = sphi 0, %s140
      %s155 = sphi 0, %s141
      %s159 = sphi 0, %s159
      %s161 = sphi 0, %s159
      %s162 = sphi 0, %s161
      %s176 = sphi 0, %s162
      %s182 = sphi 0, %s184
      %s185 = sphi 0, %s182
      %s186 = sphi 0, %s185
      %s202 = sphi 0, %s186
    $region4: #{gcn_forward.2} parent=1 // loop_header_branch
      %15 = sbr.rel (%p13) target = $region8
    $region5: #{gcn_forward.2} parent=1 // loop_body
      %s17 = ssub.s32 %s12, 1
      %s18 = ssub.s32 %s12, 2
      %s25 = sadd.s32 1, %s20
      %p26 = scmp.ge.s32.totalorder %s25, 3
      %s27 = scalar_select %p26, 0, %s25
      %s28 = sadd.s32 1, %s19
      %s29 = scalar_select %p26, %s28, %s19
      %p30 = scmp.ge.s32.totalorder %s29, 6
      %s31 = scalar_select %p30, 0, %s29
      %s32 = ssub.s32 %s19, %s31
      %s33 = ssub.s32 %s20, %s27
      %s34 = sor.u32 %s32, %s33
      %p35 = scmp.eq.s32.totalorder %s34, 0
      %s37 = sadd.s32 %s36, 1
      %s38 = scalar_select %p35, %s36, %s37
      %p41 = pneg %p35
      %p42 = scmp.eq.s32.totalorder %s12, 17
      %p43 = por %p41, %p42
      %p44 = scmp.ne.s32.totalorder %s36, %s39
      %p45 = scmp.eq.s32.totalorder %s12, 0
      %p46 = por %p44, %p45
      %p47 = scmp.ne.s32.totalorder %s36, %s39
      %p48 = scmp.eq.s32.totalorder %s17, 17
      %p49 = por %p47, %p48
      %p50 = scmp.ne.s32.totalorder %s39, %s40
      %p51 = scmp.eq.s32.totalorder %s17, 0
      %p52 = por %p50, %p51
      %p53 = scmp.ne.s32.totalorder %s39, %s40
      %p54 = scmp.eq.s32.totalorder %s18, 17
      %p55 = por %p53, %p54
      %p57 = scmp.ne.s32.totalorder %s40, %s56
      %p58 = scmp.eq.s32.totalorder %s18, 0
      %p59 = por %p57, %p58
      %s60 = ssub.s32 %s20, %s27
      %p61 = scmp.eq.s32.totalorder %s60, 0
      %s63 = sadd.s32 %s62, 1
      %s64 = scalar_select %p61, %s62, %s63
      %p67 = pneg %p61
      %p68 = scmp.eq.s32.totalorder %s12, 17
      %p69 = por %p67, %p68
      %p70 = scmp.ne.s32.totalorder %s62, %s65
      %p71 = scmp.eq.s32.totalorder %s12, 0
      %p72 = por %p70, %p71
      %p73 = scmp.ne.s32.totalorder %s62, %s65
      %p74 = scmp.eq.s32.totalorder %s17, 17
      %p75 = por %p73, %p74
      %p76 = scmp.ne.s32.totalorder %s65, %s66
      %p77 = scmp.eq.s32.totalorder %s17, 0
      %p78 = por %p76, %p77
      %p79 = scmp.ne.s32.totalorder %s65, %s66
      %p80 = scmp.eq.s32.totalorder %s18, 17
      %p81 = por %p79, %p80
      %p83 = scmp.ne.s32.totalorder %s66, %s82
      %p84 = scmp.eq.s32.totalorder %s18, 0
      %p85 = por %p83, %p84
      %s86 = ssub.s32 %s19, %s31
      %p87 = scmp.eq.s32.totalorder %s86, 0
      %s89 = sadd.s32 %s88, 1
      %s90 = scalar_select %p87, %s88, %s89
      %p93 = pneg %p87
      %p94 = scmp.eq.s32.totalorder %s12, 17
      %p95 = por %p93, %p94
      %p96 = scmp.ne.s32.totalorder %s88, %s91
      %p97 = scmp.eq.s32.totalorder %s12, 0
      %p98 = por %p96, %p97
      %p99 = scmp.ne.s32.totalorder %s88, %s91
      %p100 = scmp.eq.s32.totalorder %s17, 17
      %p101 = por %p99, %p100
      %p102 = scmp.ne.s32.totalorder %s91, %s92
      %p103 = scmp.eq.s32.totalorder %s17, 0
      %p104 = por %p102, %p103
      %p105 = scmp.ne.s32.totalorder %s91, %s92
      %p106 = scmp.eq.s32.totalorder %s18, 17
      %p107 = por %p105, %p106
      %p109 = scmp.ne.s32.totalorder %s92, %s108
      %p110 = scmp.eq.s32.totalorder %s18, 0
      %p111 = por %p109, %p110
      %s112 = ssub.s32 %s19, %s31
      %p113 = scmp.eq.s32.totalorder %s112, 0
      %s115 = sadd.s32 %s114, 1
      %s116 = scalar_select %p113, %s114, %s115
      %p119 = pneg %p113
      %p120 = scmp.eq.s32.totalorder %s12, 17
      %p121 = por %p119, %p120
      %p122 = scmp.ne.s32.totalorder %s114, %s117
      %p123 = scmp.eq.s32.totalorder %s12, 0
      %p124 = por %p122, %p123
      %p125 = scmp.ne.s32.totalorder %s114, %s117
      %p126 = scmp.eq.s32.totalorder %s17, 17
      %p127 = por %p125, %p126
      %p128 = scmp.ne.s32.totalorder %s117, %s118
      %p129 = scmp.eq.s32.totalorder %s17, 0
      %p130 = por %p128, %p129
      %p131 = scmp.ne.s32.totalorder %s117, %s118
      %p132 = scmp.eq.s32.totalorder %s18, 17
      %p133 = por %p131, %p132
      %p135 = scmp.ne.s32.totalorder %s118, %s134
      %p136 = scmp.eq.s32.totalorder %s18, 0
      %p137 = por %p135, %p136
      %s139 = sadd.s32 %s138, 1
      %p142 = scmp.eq.s32.totalorder %s12, 17
      %p143 = scmp.ne.s32.totalorder %s138, %s140
      %p144 = scmp.eq.s32.totalorder %s12, 0
      %p145 = por %p143, %p144
      %p146 = scmp.ne.s32.totalorder %s138, %s140
      %p147 = scmp.eq.s32.totalorder %s17, 17
      %p148 = por %p146, %p147
      %p149 = scmp.ne.s32.totalorder %s140, %s141
      %p150 = scmp.eq.s32.totalorder %s17, 0
      %p151 = por %p149, %p150
      %p152 = scmp.ne.s32.totalorder %s140, %s141
      %p153 = scmp.eq.s32.totalorder %s18, 17
      %p154 = por %p152, %p153
      %p156 = scmp.ne.s32.totalorder %s141, %s155
      %p157 = scmp.eq.s32.totalorder %s18, 0
      %p158 = por %p156, %p157
      %s160 = sadd.s32 %s159, 1
      %p163 = scmp.eq.s32.totalorder %s12, 17
      %p164 = scmp.ne.s32.totalorder %s159, %s161
      %p165 = scmp.eq.s32.totalorder %s12, 0
      %p166 = por %p164, %p165
      %p167 = scmp.ne.s32.totalorder %s159, %s161
      %p168 = scmp.eq.s32.totalorder %s17, 17
      %p169 = por %p167, %p168
      %p170 = scmp.ne.s32.totalorder %s161, %s162
      %p171 = scmp.eq.s32.totalorder %s17, 0
      %p172 = por %p170, %p171
      %p173 = scmp.ne.s32.totalorder %s161, %s162
      %p174 = scmp.eq.s32.totalorder %s18, 17
      %p175 = por %p173, %p174
      %p177 = scmp.ne.s32.totalorder %s162, %s176
      %p178 = scmp.eq.s32.totalorder %s18, 0
      %p179 = por %p177, %p178
      %s180 = ssub.s32 %s19, %s31
      %p181 = scmp.eq.s32.totalorder %s180, 0
      %s183 = sadd.s32 %s182, 1
      %s184 = scalar_select %p181, %s182, %s183
      %p187 = pneg %p181
      %p188 = scmp.eq.s32.totalorder %s12, 17
      %p189 = por %p187, %p188
      %p190 = scmp.ne.s32.totalorder %s182, %s185
      %p191 = scmp.eq.s32.totalorder %s12, 0
      %p192 = por %p190, %p191
      %p193 = scmp.ne.s32.totalorder %s182, %s185
      %p194 = scmp.eq.s32.totalorder %s17, 17
      %p195 = por %p193, %p194
      %p196 = scmp.ne.s32.totalorder %s185, %s186
      %p197 = scmp.eq.s32.totalorder %s17, 0
      %p198 = por %p196, %p197
      %p199 = scmp.ne.s32.totalorder %s185, %s186
      %p200 = scmp.eq.s32.totalorder %s18, 17
      %p201 = por %p199, %p200
      %p203 = scmp.ne.s32.totalorder %s186, %s202
      %p204 = scmp.eq.s32.totalorder %s18, 0
      %p205 = por %p203, %p204
      %p206 = scmp.le.s32.totalorder 1, %s12
      %p207 = scmp.lt.s32.totalorder %s12, 19
      %p208 = pnand %p206, %p207
      %p209 = pneg %p208
      // Predicated region
      $region9: #{gcn_forward.2} parent=5 // pred_check
        _
      $region10: #{gcn_forward.2} parent=5 // pred_check_branch
        %211 = sbr.rel (%p208) target = $region12
      $region11: #{gcn_forward.2} parent=5 // pred_region
        %s212 = ssub.s32 %s12, 1
        // Predicated region
        $region13: #{gcn_forward.2} parent=11 // pred_check
          %p213 = pneg %p151
        $region14: #{gcn_forward.2} parent=11 // pred_check_branch
          %215 = sbr.rel (%p213) target = $region16
        $region15: #{gcn_forward.2} parent=11 // pred_region
          _
        $region16: #{gcn_forward.2} parent=11 // pred_fallthru
          _
        // Predicated region
        $region17: #{gcn_forward.2} parent=11 // pred_check
          %p216 = pneg %p172
        $region18: #{gcn_forward.2} parent=11 // pred_check_branch
          %218 = sbr.rel (%p216) target = $region20
        $region19: #{gcn_forward.2} parent=11 // pred_region
          _
        $region20: #{gcn_forward.2} parent=11 // pred_fallthru
          _
      $region12: #{gcn_forward.2} parent=5 // pred_fallthru
        _
      %p219 = scmp.lt.s32.totalorder %s12, 18
      // Predicated region
      $region21: #{gcn_forward.2} parent=5 // pred_check
        %p220 = pneg %p219
      $region22: #{gcn_forward.2} parent=5 // pred_check_branch
        %222 = sbr.rel (%p220) target = $region24
      $region23: #{gcn_forward.2} parent=5 // pred_region
        // Predicated region
        $region25: #{gcn_forward.2} parent=23 // pred_check
          %p223 = pneg %p46
        $region26: #{gcn_forward.2} parent=23 // pred_check_branch
          %225 = sbr.rel (%p223) target = $region28
        $region27: #{gcn_forward.2} parent=23 // pred_region
          %s226 = sand.u32 %s36, 1
          %s227 = sand.u32 %s36, 1
          %s228 = smul.addr %s227, 32
          %s229 = scalar_lea.vmem [#allocation3], %s228
          %s230 = smul.u32 8, %s19
          %s231 = smul.addr %s230, 3
          %s232 = sadd.s32 %s20, %s231
          %s233 = smul.addr %s232, 4
          %s234 = scalar_lea.vmem %s0, %s233
          // Predicated region
          $region29: #{gcn_forward.2} parent=27 // pred_check
            _
          $region30: #{gcn_forward.2} parent=27 // pred_check_branch
            %236 = sbr.rel (0) target = $region32
          $region31: #{gcn_forward.2} parent=27 // pred_region
            // Predicated region
            $region33: #{gcn_forward.2} parent=31 // pred_check
              _
            $region34: #{gcn_forward.2} parent=31 // pred_check_branch
              %238 = sbr.rel target = $region36
            $region35: #{gcn_forward.2} parent=31 // pred_region
              // Predicated region
              $region48: #{gcn_forward.2} parent=35 // pred_check
                _
              $region49: #{gcn_forward.2} parent=35 // pred_check_branch
                %268 = sbr.rel (0) target = $region51
              $region50: #{gcn_forward.2} parent=35 // pred_region
                loop: start=0, step=1, limit=1
                $region52: #{gcn_forward.2} parent=50 // loop_pre_header
                  _
                $region53: #{gcn_forward.2} parent=50 // loop_header
                  %s270 = sphi 0, %s274
                  %p271 = scmp.ge.s32.totalorder %s270, 1
                  %s275 = sphi %s234, %s234
                  %s276 = sphi %s229, %s229
                $region54: #{gcn_forward.2} parent=50 // loop_header_branch
                  %273 = sbr.rel (%p271) target = $region58
                $region55: #{gcn_forward.2} parent=50 // loop_body
                  _
                $region56: #{gcn_forward.2} parent=50 // loop_footer
                  %s274 = sadd.s32 1, %s270
                $region57: #{gcn_forward.2} parent=50 // loop_footer_branch
                  %269 = sbr.rel target = $region53
                $region58: #{gcn_forward.2} parent=50 // loop_exit
                  _
                %s278 = ssub.s32 16, 1
                loop: start=0, step=1, limit=1
                $region59: #{gcn_forward.2} parent=50 // loop_pre_header
                  _
                $region60: #{gcn_forward.2} parent=50 // loop_header
                  %s280 = sphi 0, %s284
                  %p281 = scmp.ge.s32.totalorder %s280, 1
                  %s285 = sphi %s234, %s234
                  %s286 = sphi %s229, %s229
                $region61: #{gcn_forward.2} parent=50 // loop_header_branch
                  %283 = sbr.rel (%p281) target = $region65
                $region62: #{gcn_forward.2} parent=50 // loop_body
                  %v287 = vld [vmem:[%s285] sm:%s278]
                  %288 = vst [vmem:[%s286] sm:%s278] %v287
                  %v289 = vld [vmem:[%s285 + $0xc] sm:%s278]
                  %290 = vst [vmem:[%s286 + $0x4] sm:%s278] %v289
                  %v291 = vld [vmem:[%s285 + $0x18] sm:%s278]
                  %292 = vst [vmem:[%s286 + $0x8] sm:%s278] %v291
                  %v293 = vld [vmem:[%s285 + $0x24] sm:%s278]
                  %294 = vst [vmem:[%s286 + $0xc] sm:%s278] %v293
                  %v295 = vld [vmem:[%s285 + $0x30] sm:%s278]
                  %296 = vst [vmem:[%s286 + $0x10] sm:%s278] %v295
                  %v297 = vld [vmem:[%s285 + $0x3c] sm:%s278]
                  %298 = vst [vmem:[%s286 + $0x14] sm:%s278] %v297
                  %v299 = vld [vmem:[%s285 + $0x48] sm:%s278]
                  %300 = vst [vmem:[%s286 + $0x18] sm:%s278] %v299
                  %v301 = vld [vmem:[%s285 + $0x54] sm:%s278]
                  %302 = vst [vmem:[%s286 + $0x1c] sm:%s278] %v301
                $region63: #{gcn_forward.2} parent=50 // loop_footer
                  %s284 = sadd.s32 1, %s280
                $region64: #{gcn_forward.2} parent=50 // loop_footer_branch
                  %279 = sbr.rel target = $region60
                $region65: #{gcn_forward.2} parent=50 // loop_exit
                  _
              $region51: #{gcn_forward.2} parent=35 // pred_fallthru
                _
            $region36: #{gcn_forward.2} parent=31 // pred_fallthru
              _
            // Predicated region
            $region37: #{gcn_forward.2} parent=31 // pred_check
              _
            $region38: #{gcn_forward.2} parent=31 // pred_check_branch
              %240 = sbr.rel (0) target = $region40
            $region39: #{gcn_forward.2} parent=31 // pred_region
              %s242 = ssub.s32 16, 1
              loop: start=0, step=1, limit=1
              $region41: #{gcn_forward.2} parent=39 // loop_pre_header
                _
              $region42: #{gcn_forward.2} parent=39 // loop_header
                %s244 = sphi 0, %s248
                %p245 = scmp.ge.s32.totalorder %s244, 1
                %s249 = sphi %s234, %s234
                %s250 = sphi %s229, %s229
              $region43: #{gcn_forward.2} parent=39 // loop_header_branch
                %247 = sbr.rel (%p245) target = $region47
              $region44: #{gcn_forward.2} parent=39 // loop_body
                %v251 = vld [vmem:[%s249] sm:%s242]
                %252 = vst [vmem:[%s250] sm:%s242] %v251
                %v253 = vld [vmem:[%s249 + $0xc] sm:%s242]
                %254 = vst [vmem:[%s250 + $0x4] sm:%s242] %v253
                %v255 = vld [vmem:[%s249 + $0x18] sm:%s242]
                %256 = vst [vmem:[%s250 + $0x8] sm:%s242] %v255
                %v257 = vld [vmem:[%s249 + $0x24] sm:%s242]
                %258 = vst [vmem:[%s250 + $0xc] sm:%s242] %v257
                %v259 = vld [vmem:[%s249 + $0x30] sm:%s242]
                %260 = vst [vmem:[%s250 + $0x10] sm:%s242] %v259
                %v261 = vld [vmem:[%s249 + $0x3c] sm:%s242]
                %262 = vst [vmem:[%s250 + $0x14] sm:%s242] %v261
                %v263 = vld [vmem:[%s249 + $0x48] sm:%s242]
                %264 = vst [vmem:[%s250 + $0x18] sm:%s242] %v263
                %v265 = vld [vmem:[%s249 + $0x54] sm:%s242]
                %266 = vst [vmem:[%s250 + $0x1c] sm:%s242] %v265
              $region45: #{gcn_forward.2} parent=39 // loop_footer
                %s248 = sadd.s32 1, %s244
              $region46: #{gcn_forward.2} parent=39 // loop_footer_branch
                %243 = sbr.rel target = $region42
              $region47: #{gcn_forward.2} parent=39 // loop_exit
                _
            $region40: #{gcn_forward.2} parent=31 // pred_fallthru
              _
          $region32: #{gcn_forward.2} parent=27 // pred_fallthru
            _
          %303 = vnop
        $region28: #{gcn_forward.2} parent=23 // pred_fallthru
          _
        // Predicated region
        $region66: #{gcn_forward.2} parent=23 // pred_check
          %p304 = pneg %p72
        $region67: #{gcn_forward.2} parent=23 // pred_check_branch
          %306 = sbr.rel (%p304) target = $region69
        $region68: #{gcn_forward.2} parent=23 // pred_region
          %s307 = smul.u32 16, %s20
          %p308 = scmp.lt.s32.totalorder %s307, 47
          %s309 = scalar_select %p308, %s307, 47
          %s310 = smul.addr %s309, 4
          %s311 = scalar_lea.vmem %s1, %s310
          %s312 = smul.u32 16, %s20
        $region69: #{gcn_forward.2} parent=23 // pred_fallthru
          _
        // Predicated region
        $region70: #{gcn_forward.2} parent=23 // pred_check
          %p313 = pneg %p98
        $region71: #{gcn_forward.2} parent=23 // pred_check_branch
          %315 = sbr.rel (%p313) target = $region73
        $region72: #{gcn_forward.2} parent=23 // pred_region
          %s316 = smul.u32 8, %s19
          %p317 = scmp.lt.s32.totalorder %s316, 47
          %s318 = scalar_select %p317, %s316, 47
          %s319 = smul.addr %s318, 4
          %s320 = scalar_lea.vmem %s2, %s319
          %s321 = smul.u32 8, %s19
        $region73: #{gcn_forward.2} parent=23 // pred_fallthru
          _
        // Predicated region
        $region74: #{gcn_forward.2} parent=23 // pred_check
          %p322 = pneg %p124
        $region75: #{gcn_forward.2} parent=23 // pred_check_branch
          %324 = sbr.rel (%p322) target = $region77
        $region76: #{gcn_forward.2} parent=23 // pred_region
          %s325 = smul.u32 8, %s19
          %p326 = scmp.lt.s32.totalorder %s325, 47
          %s327 = scalar_select %p326, %s325, 47
          %s328 = smul.addr %s327, 8
          %s329 = scalar_lea.vmem %s3, %s328
          %s330 = smul.u32 8, %s19
        $region77: #{gcn_forward.2} parent=23 // pred_fallthru
          _
      $region24: #{gcn_forward.2} parent=5 // pred_fallthru
        _
      %p331 = scmp.le.s32.totalorder 1, %s12
      %p332 = scmp.lt.s32.totalorder %s12, 19
      %p333 = pnand %p331, %p332
      %p334 = pneg %p333
      // Predicated region
      $region78: #{gcn_forward.2} parent=5 // pred_check
        _
      $region79: #{gcn_forward.2} parent=5 // pred_check_branch
        %336 = sbr.rel (%p333) target = $region81
      $region80: #{gcn_forward.2} parent=5 // pred_region
        %s337 = ssub.s32 %s12, 1
        %s338 = sand.u32 %s39, 1
        %s339 = sand.u32 %s39, 1
        %s340 = smul.addr %s339, 32
        %s341 = scalar_lea.vmem [#allocation3], %s340
        // Predicated region
        $region82: #{gcn_forward.2} parent=80 // pred_check
          %p342 = pneg %p52
        $region83: #{gcn_forward.2} parent=80 // pred_check_branch
          %344 = sbr.rel (%p342) target = $region85
        $region84: #{gcn_forward.2} parent=80 // pred_region
          _
        $region85: #{gcn_forward.2} parent=80 // pred_fallthru
          _
        %s345 = sand.u32 %s39, 1
        %s346 = sand.u32 %s39, 1
        %s347 = smul.addr %s346, 32
        %s348 = scalar_lea.vmem [#allocation3], %s347
        %p349 = pneg %p52
        %p350 = pneg %p49
        %s351 = smul.u32 16, %s22
        %p352 = scmp.lt.s32.totalorder %s351, 47
        %s353 = scalar_select %p352, %s351, 47
        %s354 = smul.addr %s353, 4
        %s355 = scalar_lea.vmem %s1, %s354
        %p356 = pneg %p78
        %p357 = pneg %p75
        %s358 = smul.u32 8, %s21
        %p359 = scmp.lt.s32.totalorder %s358, 47
        %s360 = scalar_select %p359, %s358, 47
        %s361 = smul.addr %s360, 4
        %s362 = scalar_lea.vmem %s2, %s361
        %p363 = pneg %p104
        %p364 = pneg %p101
        %s365 = smul.u32 8, %s21
        %p366 = scmp.lt.s32.totalorder %s365, 47
        %s367 = scalar_select %p366, %s365, 47
        %s368 = smul.addr %s367, 8
        %s369 = scalar_lea.vmem %s3, %s368
        %p370 = pneg %p130
        %p371 = pneg %p127
        %p372 = pneg %p151
        %p373 = pneg %p148
        %p374 = pneg %p172
        %p375 = pneg %p169
        %p376 = pneg %p198
        %p377 = pneg %p195
        %s378 = smul.u32 8, %s21
        %p379 = scmp.lt.s32.totalorder %s378, 47
        %s380 = scalar_select %p379, %s378, 47
        %s381 = smul.addr %s380, 4
        %s382 = scalar_lea.vmem %s6, %s381
        %s383 = smul.u32 8, %s21
        %s384 = smul.u32 16, %s22
        %p385 = scmp.lt.s32.totalorder %s384, 47
        %s386 = scalar_select %p385, %s384, 47
        %s387 = smul.addr %s386, 4
        %s388 = scalar_lea.vmem %s1, %s387
        %s389 = smul.u32 16, %s22
        %s390 = smul.u32 8, %s21
        %p391 = scmp.lt.s32.totalorder %s390, 47
        %s392 = scalar_select %p391, %s390, 47
        %s393 = smul.addr %s392, 4
        %s394 = scalar_lea.vmem %s2, %s393
        %s395 = smul.u32 8, %s21
        %s396 = smul.u32 8, %s21
        %p397 = scmp.lt.s32.totalorder %s396, 47
        %s398 = scalar_select %p397, %s396, 47
        %s399 = smul.addr %s398, 8
        %s400 = scalar_lea.vmem %s3, %s399
        %s401 = smul.u32 8, %s21
        %s402 = smul.u32 8, %s21
        %p403 = scmp.lt.s32.totalorder %s402, 47
        %s404 = scalar_select %p403, %s402, 47
        %s405 = smul.addr %s404, 4
        %s406 = scalar_lea.vmem %s6, %s405
        %s407 = smul.u32 8, %s21
        %p409 = scmp.eq.s32.totalorder %s22, 0
        // Predicated region
        $region86: #{gcn_forward.2} parent=80 // pred_check
          %p410 = pneg %p409
        $region87: #{gcn_forward.2} parent=80 // pred_check_branch
          %412 = sbr.rel (%p410) target = $region89
        $region88: #{gcn_forward.2} parent=80 // pred_region
          %vm413 = vcmask 261120
          %414 = vst.msk [vmem:[#allocation2] sm:$0xff] %vm413, 0.0
          %415 = vst.msk [vmem:[#allocation2 + $0x8] sm:$0xff] %vm413, 0.0
          %416 = vst.msk [vmem:[#allocation2 + $0x10] sm:$0xff] %vm413, 0.0
          %417 = vst.msk [vmem:[#allocation2 + $0x18] sm:$0xff] %vm413, 0.0
          %418 = vst.msk [vmem:[#allocation2 + $0x20] sm:$0xff] %vm413, 0.0
          %419 = vst.msk [vmem:[#allocation2 + $0x28] sm:$0xff] %vm413, 0.0
          %420 = vst.msk [vmem:[#allocation2 + $0x30] sm:$0xff] %vm413, 0.0
          %421 = vst.msk [vmem:[#allocation2 + $0x38] sm:$0xff] %vm413, 0.0
        $region89: #{gcn_forward.2} parent=80 // pred_fallthru
          _
        %v422 = vld [vmem:[#allocation2] sm:$0xff]
        %v423 = vld [vmem:[#allocation2 + $0x8] sm:$0xff]
        %v424 = vld [vmem:[#allocation2 + $0x10] sm:$0xff]
        %v425 = vld [vmem:[#allocation2 + $0x18] sm:$0xff]
        %v426 = vld [vmem:[#allocation2 + $0x20] sm:$0xff]
        %v427 = vld [vmem:[#allocation2 + $0x28] sm:$0xff]
        %v428 = vld [vmem:[#allocation2 + $0x30] sm:$0xff]
        %v429 = vld [vmem:[#allocation2 + $0x38] sm:$0xff]
        %v430 = vld [vmem:[%s341] sm:$0xf]
        %v431 = vld [vmem:[%s341 + $0x4] sm:$0xf]
        %v432 = vld [vmem:[%s341 + $0x8] sm:$0xf]
        %v433 = vld [vmem:[%s341 + $0xc] sm:$0xf]
        %v434 = vld [vmem:[%s341 + $0x10] sm:$0xf]
        %v435 = vld [vmem:[%s341 + $0x14] sm:$0xf]
        %v436 = vld [vmem:[%s341 + $0x18] sm:$0xf]
        %v437 = vld [vmem:[%s341 + $0x1c] sm:$0xf]
        %v438 = vld [vmem:[%s388] sm:$0xf]
        %v439 = vld [vmem:[%s388 + $0x4] sm:$0xf]
        %v440 = vld [vmem:[%s388 + $0x8] sm:$0xf]
        %v441 = vld [vmem:[%s388 + $0xc] sm:$0xf]
        %v442 = vld [vmem:[%s388 + $0x10] sm:$0xf]
        %v443 = vld [vmem:[%s388 + $0x14] sm:$0xf]
        %v444 = vld [vmem:[%s388 + $0x18] sm:$0xf]
        %v445 = vld [vmem:[%s388 + $0x1c] sm:$0xf]
        %v446 = vld [vmem:[%s388 + $0x20] sm:$0xf]
        %v447 = vld [vmem:[%s388 + $0x24] sm:$0xf]
        %v448 = vld [vmem:[%s388 + $0x28] sm:$0xf]
        %v449 = vld [vmem:[%s388 + $0x2c] sm:$0xf]
        %v450 = vld [vmem:[%s388 + $0x30] sm:$0xf]
        %v451 = vld [vmem:[%s388 + $0x34] sm:$0xf]
        %v452 = vld [vmem:[%s388 + $0x38] sm:$0xf]
        %v453 = vld [vmem:[%s388 + $0x3c] sm:$0xf]
        %v462 = vunpack.c.l.b16 %v430
        %v463 = vunpack.c.l.b16 %v431
        %v464 = vunpack.c.l.b16 %v432
        %v465 = vunpack.c.l.b16 %v433
        %v466 = vunpack.c.l.b16 %v434
        %v467 = vunpack.c.l.b16 %v435
        %v468 = vunpack.c.l.b16 %v436
        %v469 = vunpack.c.l.b16 %v437
        %v470 = vpack.c.b16 %v463, %v462
        %v471 = vpack.c.b16 %v465, %v464
        %v472 = vpack.c.b16 %v467, %v466
        %v473 = vpack.c.b16 %v469, %v468
        %v494 = vunpack.c.l.b16 %v438
        %v495 = vunpack.c.l.b16 %v439
        %v496 = vunpack.c.l.b16 %v440
        %v497 = vunpack.c.l.b16 %v441
        %v498 = vunpack.c.l.b16 %v442
        %v499 = vunpack.c.l.b16 %v443
        %v500 = vunpack.c.l.b16 %v444
        %v501 = vunpack.c.l.b16 %v445
        %v502 = vunpack.c.l.b16 %v446
        %v503 = vunpack.c.l.b16 %v447
        %v504 = vunpack.c.l.b16 %v448
        %v505 = vunpack.c.l.b16 %v449
        %v506 = vunpack.c.l.b16 %v450
        %v507 = vunpack.c.l.b16 %v451
        %v508 = vunpack.c.l.b16 %v452
        %v509 = vunpack.c.l.b16 %v453
        %v510 = vpack.c.b16 %v495, %v494
        %v511 = vpack.c.b16 %v497, %v496
        %v512 = vpack.c.b16 %v499, %v498
        %v513 = vpack.c.b16 %v501, %v500
        %v514 = vpack.c.b16 %v503, %v502
        %v515 = vpack.c.b16 %v505, %v504
        %v516 = vpack.c.b16 %v507, %v506
        %v517 = vpack.c.b16 %v509, %v508
        %526 = vmatprep.subr.bf16.mxu0 0
        %527 = vmatpush1.bf16.msra.mxu0 %v517
        %528 = vmatprep.subr.bf16.mxu0 0
        %529 = vmatpush1.bf16.msra.mxu0 %v516
        %530 = vmatprep.subr.bf16.mxu0 0
        %531 = vmatpush1.bf16.msra.mxu0 %v515
        %532 = vmatprep.subr.bf16.mxu0 0
        %533 = vmatpush1.bf16.msra.mxu0 %v514
        %534 = vmatprep.subr.bf16.mxu0 0
        %535 = vmatpush1.bf16.msra.mxu0 %v513
        %536 = vmatprep.subr.bf16.mxu0 0
        %537 = vmatpush1.bf16.msra.mxu0 %v512
        %538 = vmatprep.subr.bf16.mxu0 0
        %539 = vmatpush1.bf16.msra.mxu0 %v511
        %540 = vmatprep.subr.bf16.mxu0 0
        %541 = vmatpush1.bf16.msra.mxu0 %v510
        %542 = vmatprep.subr.bf16.mxu0 0
        %543 = vmatpush2.bf16.msra.mxu0 0
        %544 = vmatprep.subr.bf16.mxu0 0
        %545 = vmatpush2.bf16.msra.mxu0 0
        %546 = vmatprep.subr.bf16.mxu0 0
        %547 = vmatpush2.bf16.msra.mxu0 0
        %548 = vmatprep.subr.bf16.mxu0 0
        %549 = vmatpush2.bf16.msra.mxu0 0
        %550 = vmatprep.subr.bf16.mxu0 0
        %551 = vmatpush2.bf16.msra.mxu0 0
        %552 = vmatprep.subr.bf16.mxu0 0
        %553 = vmatpush2.bf16.msra.mxu0 0
        %554 = vmatprep.subr.bf16.mxu0 0
        %555 = vmatpush2.bf16.msra.mxu0 0
        %556 = vmatprep.subr.bf16.mxu0 0
        %557 = vmatpush2.bf16.msra.mxu0 0
        %558 = vmatprep.mubr.bf16.mxu0 0
        %559 = vmatmul.mubr.bf16.gmra.mxu0 %v470
        %v560 = vpop.f32.mrf.mxu0
        %v561 = vadd.f32 0.0, %v560
        %v562 = vpop.f32.mrf.mxu0
        %v563 = vpop.f32.mrf.mxu0
        %v564 = vadd.f32 0.0, %v563
        %v565 = vpop.f32.mrf.mxu0
        %566 = vmatprep.mubr.bf16.mxu0 0
        %567 = vmatmul.mubr.bf16.gmra.mxu0 %v471
        %v568 = vpop.f32.mrf.mxu0
        %v569 = vadd.f32 0.0, %v568
        %v570 = vpop.f32.mrf.mxu0
        %v571 = vpop.f32.mrf.mxu0
        %v572 = vadd.f32 0.0, %v571
        %v573 = vpop.f32.mrf.mxu0
        %574 = vmatprep.mubr.bf16.mxu0 0
        %575 = vmatmul.mubr.bf16.gmra.mxu0 %v472
        %v576 = vpop.f32.mrf.mxu0
        %v577 = vadd.f32 0.0, %v576
        %v578 = vpop.f32.mrf.mxu0
        %v579 = vpop.f32.mrf.mxu0
        %v580 = vadd.f32 0.0, %v579
        %v581 = vpop.f32.mrf.mxu0
        %582 = vmatprep.mubr.bf16.mxu0 0
        %583 = vmatmul.mubr.bf16.gmra.mxu0 %v473
        %v584 = vpop.f32.mrf.mxu0
        %v585 = vadd.f32 0.0, %v584
        %v586 = vpop.f32.mrf.mxu0
        %v587 = vpop.f32.mrf.mxu0
        %v588 = vadd.f32 0.0, %v587
        %v589 = vpop.f32.mrf.mxu0
        %590 = vdwg.mxu0
        %v591 = vadd.f32 %v422, %v561
        %v592 = vadd.f32 %v423, %v564
        %v593 = vadd.f32 %v424, %v569
        %v594 = vadd.f32 %v425, %v572
        %v595 = vadd.f32 %v426, %v577
        %v596 = vadd.f32 %v427, %v580
        %v597 = vadd.f32 %v428, %v585
        %v598 = vadd.f32 %v429, %v588
        %vm599 = vcmask 261120
        %600 = vst.msk [vmem:[#allocation2] sm:$0xff] %vm599, %v591
        %601 = vst.msk [vmem:[#allocation2 + $0x8] sm:$0xff] %vm599, %v592
        %602 = vst.msk [vmem:[#allocation2 + $0x10] sm:$0xff] %vm599, %v593
        %603 = vst.msk [vmem:[#allocation2 + $0x18] sm:$0xff] %vm599, %v594
        %604 = vst.msk [vmem:[#allocation2 + $0x20] sm:$0xff] %vm599, %v595
        %605 = vst.msk [vmem:[#allocation2 + $0x28] sm:$0xff] %vm599, %v596
        %606 = vst.msk [vmem:[#allocation2 + $0x30] sm:$0xff] %vm599, %v597
        %607 = vst.msk [vmem:[#allocation2 + $0x38] sm:$0xff] %vm599, %v598
        %p608 = scmp.eq.s32.totalorder %s22, 2
        // Predicated region
        $region90: #{gcn_forward.2} parent=80 // pred_check
          %p609 = pneg %p608
        $region91: #{gcn_forward.2} parent=80 // pred_check_branch
          %611 = sbr.rel (%p609) target = $region93
        $region92: #{gcn_forward.2} parent=80 // pred_region
          %v612 = vld [vmem:[%s400] sm:$0xff]
          %v613 = vld [vmem:[%s400 + $0x8] sm:$0xff]
          %v614 = vld [vmem:[%s400 + $0x10] sm:$0xff]
          %v615 = vld [vmem:[%s400 + $0x18] sm:$0xff]
          %v616 = vld [vmem:[%s400 + $0x20] sm:$0xff]
          %v617 = vld [vmem:[%s400 + $0x28] sm:$0xff]
          %v618 = vld [vmem:[%s400 + $0x30] sm:$0xff]
          %v619 = vld [vmem:[%s400 + $0x38] sm:$0xff]
          %v620 = vld [vmem:[#allocation2] sm:$0xff]
          %v621 = vld [vmem:[#allocation2 + $0x8] sm:$0xff]
          %v622 = vld [vmem:[#allocation2 + $0x10] sm:$0xff]
          %v623 = vld [vmem:[#allocation2 + $0x18] sm:$0xff]
          %v624 = vld [vmem:[#allocation2 + $0x20] sm:$0xff]
          %v625 = vld [vmem:[#allocation2 + $0x28] sm:$0xff]
          %v626 = vld [vmem:[#allocation2 + $0x30] sm:$0xff]
          %v627 = vld [vmem:[#allocation2 + $0x38] sm:$0xff]
          %v628 = vld [vmem:[%s394] sm:$0xf]
          %v629 = vld [vmem:[%s394 + $0x4] sm:$0xf]
          %v630 = vld [vmem:[%s394 + $0x8] sm:$0xf]
          %v631 = vld [vmem:[%s394 + $0xc] sm:$0xf]
          %v632 = vld [vmem:[%s394 + $0x10] sm:$0xf]
          %v633 = vld [vmem:[%s394 + $0x14] sm:$0xf]
          %v634 = vld [vmem:[%s394 + $0x18] sm:$0xf]
          %v635 = vld [vmem:[%s394 + $0x1c] sm:$0xf]
          %v636 = vunpack.c.l.bf16 %v628
          %v637 = vunpack.c.l.bf16 %v629
          %v638 = vunpack.c.l.bf16 %v630
          %v639 = vunpack.c.l.bf16 %v631
          %v640 = vunpack.c.l.bf16 %v632
          %v641 = vunpack.c.l.bf16 %v633
          %v642 = vunpack.c.l.bf16 %v634
          %v643 = vunpack.c.l.bf16 %v635
          %645 = vset.pattern.permute.xlu0 0
          %646 = vperm.xlu0 %645, %v612
          %v647 = vpop.permute.xlu0 %646
          %650 = vset.pattern.permute.xlu0 0
          %651 = vperm.xlu0 %650, %v613
          %v652 = vpop.permute.xlu0 %651
          %655 = vset.pattern.permute.xlu0 0
          %656 = vperm.xlu0 %655, %v614
          %v657 = vpop.permute.xlu0 %656
          %660 = vset.pattern.permute.xlu0 0
          %661 = vperm.xlu0 %660, %v615
          %v662 = vpop.permute.xlu0 %661
          %665 = vset.pattern.permute.xlu0 0
          %666 = vperm.xlu0 %665, %v616
          %v667 = vpop.permute.xlu0 %666
          %670 = vset.pattern.permute.xlu0 0
          %671 = vperm.xlu0 %670, %v617
          %v672 = vpop.permute.xlu0 %671
          %675 = vset.pattern.permute.xlu0 0
          %676 = vperm.xlu0 %675, %v618
          %v677 = vpop.permute.xlu0 %676
          %680 = vset.pattern.permute.xlu0 0
          %681 = vperm.xlu0 %680, %v619
          %v682 = vpop.permute.xlu0 %681
          %v684 = vmul.f32 %v647, %v636
          %v685 = vmul.f32 %v652, %v637
          %v686 = vmul.f32 %v657, %v638
          %v687 = vmul.f32 %v662, %v639
          %v688 = vmul.f32 %v667, %v640
          %v689 = vmul.f32 %v672, %v641
          %v690 = vmul.f32 %v677, %v642
          %v691 = vmul.f32 %v682, %v643
          %v692 = vadd.f32 %v620, %v684
          %v693 = vadd.f32 %v621, %v685
          %v694 = vadd.f32 %v622, %v686
          %v695 = vadd.f32 %v623, %v687
          %v696 = vadd.f32 %v624, %v688
          %v697 = vadd.f32 %v625, %v689
          %v698 = vadd.f32 %v626, %v690
          %v699 = vadd.f32 %v627, %v691
          %700 = vset.pattern.permute.xlu0 1
          %701 = vperm.xlu0 %700, %v612
          %v702 = vpop.permute.xlu0 %701
          %704 = vset.pattern.permute.xlu0 1
          %705 = vperm.xlu0 %704, %v613
          %v706 = vpop.permute.xlu0 %705
          %708 = vset.pattern.permute.xlu0 1
          %709 = vperm.xlu0 %708, %v614
          %v710 = vpop.permute.xlu0 %709
          %712 = vset.pattern.permute.xlu0 1
          %713 = vperm.xlu0 %712, %v615
          %v714 = vpop.permute.xlu0 %713
          %716 = vset.pattern.permute.xlu0 1
          %717 = vperm.xlu0 %716, %v616
          %v718 = vpop.permute.xlu0 %717
          %720 = vset.pattern.permute.xlu0 1
          %721 = vperm.xlu0 %720, %v617
          %v722 = vpop.permute.xlu0 %721
          %724 = vset.pattern.permute.xlu0 1
          %725 = vperm.xlu0 %724, %v618
          %v726 = vpop.permute.xlu0 %725
          %728 = vset.pattern.permute.xlu0 1
          %729 = vperm.xlu0 %728, %v619
          %v730 = vpop.permute.xlu0 %729
          %v732 = vmul.f32 %v692, %v702
          %v733 = vmul.f32 %v693, %v706
          %v734 = vmul.f32 %v694, %v710
          %v735 = vmul.f32 %v695, %v714
          %v736 = vmul.f32 %v696, %v718
          %v737 = vmul.f32 %v697, %v722
          %v738 = vmul.f32 %v698, %v726
          %v739 = vmul.f32 %v699, %v730
          %v740 = vld [vmem:[%s4] sm:$0x1]
          %v742 = vlaneseq
          %v743 = vshrl.u32 %v742, 7
          %v744 = vsub.s32 0, %v743
          %v745 = vrot.slane %v740, %v744
          %v747 = vadd.f32 %v732, %v745
          %v748 = vadd.f32 %v733, %v745
          %v749 = vadd.f32 %v734, %v745
          %v750 = vadd.f32 %v735, %v745
          %v751 = vadd.f32 %v736, %v745
          %v752 = vadd.f32 %v737, %v745
          %v753 = vadd.f32 %v738, %v745
          %v754 = vadd.f32 %v739, %v745
          %v755 = vmax.f32 %v747, 0.0
          %v756 = vmax.f32 %v748, 0.0
          %v757 = vmax.f32 %v749, 0.0
          %v758 = vmax.f32 %v750, 0.0
          %v759 = vmax.f32 %v751, 0.0
          %v760 = vmax.f32 %v752, 0.0
          %v761 = vmax.f32 %v753, 0.0
          %v762 = vmax.f32 %v754, 0.0
          %v763 = vpack.c.bf16 %v756, %v755
          %v764 = vpack.c.bf16 %v758, %v757
          %v765 = vpack.c.bf16 %v760, %v759
          %v766 = vpack.c.bf16 %v762, %v761
          %v767 = vld [vmem:[%s5] sm:$0xf]
          %v768 = vld [vmem:[%s5 + $0x4] sm:$0xf]
          %v769 = vld [vmem:[%s5 + $0x8] sm:$0xf]
          %v770 = vld [vmem:[%s5 + $0xc] sm:$0xf]
          %v775 = vunpack.c.l.b16 %v767
          %v776 = vunpack.c.l.b16 %v768
          %v777 = vunpack.c.l.b16 %v769
          %v778 = vunpack.c.l.b16 %v770
          %v779 = vpack.c.b16 %v776, %v775
          %v780 = vpack.c.b16 %v778, %v777
          %v784 = vsel %vm599, %v763, 0
          %v787 = vsel %vm599, %v764, 0
          %v790 = vsel %vm599, %v765, 0
          %v793 = vsel %vm599, %v766, 0
          %795 = vmatprep.subr.bf16.mxu0 0
          %796 = vmatpush1.bf16.msra.mxu0 0
          %797 = vmatprep.subr.bf16.mxu0 0
          %798 = vmatpush1.bf16.msra.mxu0 0
          %799 = vmatprep.subr.bf16.mxu0 0
          %800 = vmatpush1.bf16.msra.mxu0 0
          %801 = vmatprep.subr.bf16.mxu0 0
          %802 = vmatpush1.bf16.msra.mxu0 0
          %803 = vmatprep.subr.bf16.mxu0 0
          %804 = vmatpush1.bf16.msra.mxu0 0
          %805 = vmatprep.subr.bf16.mxu0 0
          %806 = vmatpush1.bf16.msra.mxu0 0
          %807 = vmatprep.subr.bf16.mxu0 0
          %808 = vmatpush1.bf16.msra.mxu0 %v780
          %809 = vmatprep.subr.bf16.mxu0 0
          %810 = vmatpush1.bf16.msra.mxu0 %v779
          %811 = vmatprep.subr.bf16.mxu0 0
          %812 = vmatpush2.bf16.msra.mxu0 0
          %813 = vmatprep.subr.bf16.mxu0 0
          %814 = vmatpush2.bf16.msra.mxu0 0
          %815 = vmatprep.subr.bf16.mxu0 0
          %816 = vmatpush2.bf16.msra.mxu0 0
          %817 = vmatprep.subr.bf16.mxu0 0
          %818 = vmatpush2.bf16.msra.mxu0 0
          %819 = vmatprep.subr.bf16.mxu0 0
          %820 = vmatpush2.bf16.msra.mxu0 0
          %821 = vmatprep.subr.bf16.mxu0 0
          %822 = vmatpush2.bf16.msra.mxu0 0
          %823 = vmatprep.subr.bf16.mxu0 0
          %824 = vmatpush2.bf16.msra.mxu0 0
          %825 = vmatprep.subr.bf16.mxu0 0
          %826 = vmatpush2.bf16.msra.mxu0 0
          %827 = vmatprep.mubr.bf16.mxu0 0
          %828 = vmatmul.mubr.bf16.gmra.mxu0 %v784
          %v829 = vpop.f32.mrf.mxu0
          %v830 = vadd.f32 0.0, %v829
          %v831 = vpop.f32.mrf.mxu0
          %v832 = vpop.f32.mrf.mxu0
          %v833 = vadd.f32 0.0, %v832
          %v834 = vpop.f32.mrf.mxu0
          %835 = vmatprep.mubr.bf16.mxu0 0
          %836 = vmatmul.mubr.bf16.gmra.mxu0 %v787
          %v837 = vpop.f32.mrf.mxu0
          %v838 = vadd.f32 0.0, %v837
          %v839 = vpop.f32.mrf.mxu0
          %v840 = vpop.f32.mrf.mxu0
          %v841 = vadd.f32 0.0, %v840
          %v842 = vpop.f32.mrf.mxu0
          %843 = vmatprep.mubr.bf16.mxu0 0
          %844 = vmatmul.mubr.bf16.gmra.mxu0 %v790
          %v845 = vpop.f32.mrf.mxu0
          %v846 = vadd.f32 0.0, %v845
          %v847 = vpop.f32.mrf.mxu0
          %v848 = vpop.f32.mrf.mxu0
          %v849 = vadd.f32 0.0, %v848
          %v850 = vpop.f32.mrf.mxu0
          %851 = vmatprep.mubr.bf16.mxu0 0
          %852 = vmatmul.mubr.bf16.gmra.mxu0 %v793
          %v853 = vpop.f32.mrf.mxu0
          %v854 = vadd.f32 0.0, %v853
          %v855 = vpop.f32.mrf.mxu0
          %v856 = vpop.f32.mrf.mxu0
          %v857 = vadd.f32 0.0, %v856
          %v858 = vpop.f32.mrf.mxu0
          %859 = vdwg.mxu0
          %v860 = vpack.c.bf16 %v833, %v830
          %v861 = vpack.c.bf16 %v841, %v838
          %v862 = vpack.c.bf16 %v849, %v846
          %v863 = vpack.c.bf16 %v857, %v854
          %v868 = vunpack.c.l.b16 %v860
          %v869 = vunpack.c.h.b16 %v860
          %v870 = vunpack.c.l.b16 %v861
          %v871 = vunpack.c.h.b16 %v861
          %v872 = vunpack.c.l.b16 %v862
          %v873 = vunpack.c.h.b16 %v862
          %v874 = vunpack.c.l.b16 %v863
          %v875 = vunpack.c.h.b16 %v863
          %v876 = vpack.c.b16 %v868, %v868
          %v877 = vpack.c.b16 %v869, %v869
          %v878 = vpack.c.b16 %v870, %v870
          %v879 = vpack.c.b16 %v871, %v871
          %v880 = vpack.c.b16 %v872, %v872
          %v881 = vpack.c.b16 %v873, %v873
          %v882 = vpack.c.b16 %v874, %v874
          %v883 = vpack.c.b16 %v875, %v875
          %892 = vst [vmem:[%s406] sm:$0xf] %v876
          %893 = vst [vmem:[%s406 + $0x4] sm:$0xf] %v877
          %894 = vst [vmem:[%s406 + $0x8] sm:$0xf] %v878
          %895 = vst [vmem:[%s406 + $0xc] sm:$0xf] %v879
          %896 = vst [vmem:[%s406 + $0x10] sm:$0xf] %v880
          %897 = vst [vmem:[%s406 + $0x14] sm:$0xf] %v881
          %898 = vst [vmem:[%s406 + $0x18] sm:$0xf] %v882
          %899 = vst [vmem:[%s406 + $0x1c] sm:$0xf] %v883
        $region93: #{gcn_forward.2} parent=80 // pred_fallthru
          _
        %s900 = smul.u32 8, %s21
        %p901 = scmp.lt.s32.totalorder %s900, 47
        %s902 = scalar_select %p901, %s900, 47
        %s903 = smul.addr %s902, 4
        %s904 = scalar_lea.vmem %s6, %s903
        // Predicated region
        $region94: #{gcn_forward.2} parent=80 // pred_check
          %p905 = pneg %p195
        $region95: #{gcn_forward.2} parent=80 // pred_check_branch
          %907 = sbr.rel (%p905) target = $region97
        $region96: #{gcn_forward.2} parent=80 // pred_region
          %s908 = smul.u32 8, %s21
        $region97: #{gcn_forward.2} parent=80 // pred_fallthru
          _
      $region81: #{gcn_forward.2} parent=5 // pred_fallthru
        _
      %p909 = scmp.le.s32.totalorder 2, %s12
      // Predicated region
      $region98: #{gcn_forward.2} parent=5 // pred_check
        %p910 = pneg %p909
      $region99: #{gcn_forward.2} parent=5 // pred_check_branch
        %912 = sbr.rel (%p910) target = $region101
      $region100: #{gcn_forward.2} parent=5 // pred_region
        %s913 = ssub.s32 %s12, 2
        // Predicated region
        $region102: #{gcn_forward.2} parent=100 // pred_check
          %p914 = pneg %p201
        $region103: #{gcn_forward.2} parent=100 // pred_check_branch
          %916 = sbr.rel (%p914) target = $region105
        $region104: #{gcn_forward.2} parent=100 // pred_region
          %s917 = smul.u32 8, %s23
          %p918 = scmp.lt.s32.totalorder %s917, 47
          %s919 = scalar_select %p918, %s917, 47
          %s920 = smul.addr %s919, 4
          %s921 = scalar_lea.vmem %s6, %s920
        $region105: #{gcn_forward.2} parent=100 // pred_fallthru
          _
      $region101: #{gcn_forward.2} parent=5 // pred_fallthru
        _
    $region6: #{gcn_forward.2} parent=1 // loop_footer
      %s16 = sadd.s32 1, %s12
    $region7: #{gcn_forward.2} parent=1 // loop_footer_branch
      %11 = sbr.rel target = $region3
    $region8: #{gcn_forward.2} parent=1 // loop_exit
      _

</llo_original>
